<compile_context>
chip_gen: v7x
topology: tpu7x:2x2x1
jax: 0.10.0
libtpu: 0.0.40
codegen_flags: <defaults>
</compile_context>

<pallas_src>
import re

import jax
import jax.numpy as jnp
from jax.experimental import pallas as pl
from jax.experimental.pallas import tpu as pltpu


def _round_up(a, b):
    return -(-a // b) * b


def _tpu_generation():
    """Best-effort TPU generation (5, 6, 7, ...) or None if unknown."""
    try:
        kind = jax.devices()[0].device_kind
    except Exception:
        return None
    m = re.search(r"(\d+)", kind)
    return int(m.group(1)) if m else None


def _output_pad(output_dim):
    # Lane-dense padding only pays off for wide outputs: padding a tiny
    # output_dim (e.g. 16) to 128 multiplies output HBM writeback by 8x and
    # forces a wrapper slice copy.  Small outputs use masked stores instead.
    if output_dim > 128 and output_dim % 128 != 0:
        return _round_up(output_dim, 128)
    return output_dim


# ---------------------------------------------------------------------------
# Kernel
# ---------------------------------------------------------------------------
def _cheby_kan_kernel(x_ref, w_ref, b_ref, o_ref, t_buf):
    # x_ref : (tb, I)        activation tile
    # w_ref : (D*I, O_pad)   coeffs for degrees 1..D, degree-major, bf16
    # b_ref : (1, O_pad)     f32 bias = sum_i coeff[i, :, 0]   (the T0 term)
    # o_ref : (tb, O_pad)    output tile
    # t_buf : (tb, D*I)      bf16 VMEM scratch holding the T_1..T_D slabs
    input_dim = x_ref.shape[1]
    n_deg = w_ref.shape[0] // input_dim            # D  (degrees 1 .. D)

    # Chebyshev recurrence in f32 on the VPU.  Each slab is cast to the MXU
    # dtype and written into the scratch as soon as it is produced, so only
    # two f32 temporaries stay live (no big concat, no full-tile cast).
    t1 = jnp.tanh(x_ref[...].astype(jnp.float32))          # T1 = tanh(x)
    two_t = 2.0 * t1
    t_buf[:, 0:input_dim] = t1.astype(t_buf.dtype)
    t_prev = jnp.ones_like(t1)                              # T0
    t_cur = t1
    for d in range(1, n_deg):
        t_next = two_t * t_cur - t_prev                     # T_{d+1} = 2 t T_d - T_{d-1}
        t_buf[:, d * input_dim:(d + 1) * input_dim] = t_next.astype(t_buf.dtype)
        t_prev, t_cur = t_cur, t_next

    # Single MXU matmul with K = D*I, f32 accumulation; add the T0 bias in f32.
    acc = jnp.dot(t_buf[...], w_ref[...], preferred_element_type=jnp.float32)
    acc = acc + b_ref[...]
    o_ref[...] = acc.astype(o_ref.dtype)


# ---------------------------------------------------------------------------
# Wrapper
# ---------------------------------------------------------------------------
def pack_cheby_coeffs(cheby_coeffs, *, mxu_dtype=jnp.bfloat16):
    """One-time (per parameter update) preprocessing of the coefficients.

    Returns (w_packed, bias):
      w_packed : (degree*input_dim, o_pad) mxu_dtype, degree-major rows
      bias     : (1, o_pad) f32  -- the T0 (constant) contribution
    """
    input_dim, output_dim, deg_p1 = cheby_coeffs.shape
    degree = deg_p1 - 1
    o_pad = _output_pad(output_dim)

    c = cheby_coeffs.astype(jnp.float32)
    bias = jnp.sum(c[:, :, 0], axis=0)                               # (O,)
    bias = jnp.pad(bias, (0, o_pad - output_dim)).reshape(1, o_pad)

    if degree == 0:
        w = jnp.zeros((0, o_pad), mxu_dtype)
    else:
        # (I, O, D+1) -> (D+1, I, O) -> drop d=0 -> (D*I, O) -> pad O -> bf16.
        w = jnp.transpose(c, (2, 0, 1))[1:].reshape(degree * input_dim, output_dim)
        w = jnp.pad(w, ((0, 0), (0, o_pad - output_dim))).astype(mxu_dtype)
    return w, bias


def cheby_kan_apply(x, w_packed, bias, output_dim):
    """Forward pass with pre-packed weights.  x: (..., input_dim)."""
    input_dim = x.shape[-1]
    o_pad = bias.shape[-1]
    x2d = x.reshape(-1, input_dim)
    batch = x2d.shape[0]
    out_dtype = x.dtype

    if w_packed.shape[0] == 0:
        # degree == 0: output does not depend on x at all.
        y = jnp.broadcast_to(bias[:, :output_dim], (batch, output_dim))
        return y.astype(out_dtype)

    degree = w_packed.shape[0] // input_dim
    k_dim = degree * input_dim
    mxu_dtype = w_packed.dtype

    gen = _tpu_generation()
    two_cores = gen is not None and gen >= 7            # v7x: 2 TCs / chip
    big_vmem = gen in (5, 6)                             # 128 MiB VMEM

    # ---- batch tiling -----------------------------------------------------
    pb8 = _round_up(batch, 8)
    tb = min(1024 if big_vmem else 512, pb8)
    # Only split into >=2 grid blocks when there are 2 TensorCores to shard
    # the "parallel" axis across; on 1-TC chips it just doubles per-step
    # pipeline overhead.  Keep the split tile a 128 multiple (full MXU rows).
    if two_cores and pb8 // tb < 2:
        half = _round_up(pl.cdiv(pb8, 2), 128)
        if 256 <= half < tb:
            tb = half
    padded_batch = _round_up(batch, tb)
    if padded_batch != batch:
        # Zero rows are safe (no arccos domain issue) and sliced off below.
        x2d = jnp.pad(x2d, ((0, padded_batch - batch), (0, 0)))

    # ---- VMEM budget --------------------------------------------------------
    xb = jnp.dtype(x.dtype).itemsize
    ob = jnp.dtype(out_dtype).itemsize
    wb = jnp.dtype(mxu_dtype).itemsize
    i_lane = _round_up(input_dim, 128)
    o_lane = _round_up(o_pad, 128)
    k_lane = _round_up(k_dim, 128)
    needed = (2 * tb * i_lane * xb                       # x double buffer
              + 2 * tb * o_lane * ob                     # out double buffer
              + 2 * k_dim * o_lane * wb                  # weights (<= 2 bufs)
              + 2 * 8 * o_lane * 4                       # bias
              + tb * k_lane * wb                         # T scratch (bf16)
              + 3 * tb * i_lane * 4                      # recurrence temps
              + tb * o_lane * 4)                         # f32 accumulator
    ceiling = (96 << 20) if big_vmem else (48 << 20)
    vmem_limit = int(min(max(2 * needed, 32 << 20), ceiling))

    cost = pl.CostEstimate(
        flops=2 * padded_batch * k_dim * o_pad,
        transcendentals=padded_batch * input_dim,        # tanh
        bytes_accessed=(padded_batch * input_dim * xb
                        + k_dim * o_pad * wb + o_pad * 4
                        + padded_batch * o_pad * ob))

    out_shape = jax.ShapeDtypeStruct((padded_batch, o_pad), out_dtype)
    grid = (padded_batch // tb,)

    def _call(single_buffer_weights):
        wkw = ({"pipeline_mode": pl.Buffered(1)} if single_buffer_weights else {})
        return pl.pallas_call(
            _cheby_kan_kernel,
            out_shape=out_shape,
            grid_spec=pltpu.PrefetchScalarGridSpec(
                num_scalar_prefetch=0,
                grid=grid,
                in_specs=[
                    pl.BlockSpec((tb, input_dim), lambda b: (b, 0)),
                    pl.BlockSpec((k_dim, o_pad), lambda b: (0, 0), **wkw),
                    pl.BlockSpec((1, o_pad), lambda b: (0, 0), **wkw),
                ],
                out_specs=pl.BlockSpec((tb, o_pad), lambda b: (b, 0)),
                scratch_shapes=[pltpu.VMEM((tb, k_dim), mxu_dtype)],
            ),
            compiler_params=pltpu.CompilerParams(
                dimension_semantics=("parallel",),
                vmem_limit_bytes=vmem_limit),
            cost_estimate=cost,
        )(x2d, w_packed, bias)

    try:
        # Weight/bias index_maps are constant -> single-buffer them, halving
        # their resident VMEM (most valuable on v7x's 64 MiB).
        out = _call(True)
    except Exception:
        # Fallback if this JAX build rejects pipeline_mode on BlockSpec.
        out = _call(False)

    if padded_batch != batch or o_pad != output_dim:
        out = out[:batch, :output_dim]
    return out


def cheby_kan_layer(x, cheby_coeffs, *, mxu_dtype=jnp.bfloat16):
    """Convenience one-shot path (packs coefficients every call).
    Prefer pack_cheby_coeffs() once + cheby_kan_apply() per forward."""
    output_dim = cheby_coeffs.shape[1]
    w_packed, bias = pack_cheby_coeffs(cheby_coeffs, mxu_dtype=mxu_dtype)
    return cheby_kan_apply(x, w_packed, bias, output_dim)


# ---------------------------------------------------------------------------
# Reference + test
# ---------------------------------------------------------------------------
def _reference(x, cheby_coeffs):
    input_dim, output_dim, deg_p1 = cheby_coeffs.shape
    xb = jnp.tanh(x.reshape(-1, input_dim)).astype(jnp.float32)
    theta = jnp.arccos(xb)[:, :, None]                             # (B, I, 1)
    arange = jnp.arange(deg_p1, dtype=jnp.float32)                 # (D+1,)
    t = jnp.cos(theta * arange)                                    # (B, I, D+1)
    return jnp.einsum("bid,iod->bo", t, cheby_coeffs.astype(jnp.float32))


if __name__ == "__main__":
    input_dim, output_dim, degree = 32, 16, 4
    batch = 256

    key = jax.random.PRNGKey(0)
    k_x, k_w = jax.random.split(key)

    # nn.init.normal_(mean=0, std=1/(I*(D+1)))
    std = 1.0 / (input_dim * (degree + 1))
    cheby_coeffs = std * jax.random.normal(
        k_w, (input_dim, output_dim, degree + 1), dtype=jnp.float32)
    x = jax.random.normal(k_x, (batch, input_dim), dtype=jnp.float32)

    # Pack once (per parameter update), then apply per forward.
    w_packed, bias = pack_cheby_coeffs(cheby_coeffs)
    y = cheby_kan_apply(x, w_packed, bias, output_dim)
    jax.block_until_ready(y)

    y_ref = _reference(x, cheby_coeffs)
    assert y.shape == (batch, output_dim)
    max_err = jnp.max(jnp.abs(y.astype(jnp.float32) - y_ref))
    # bf16 MXU inputs with f32 accumulation -> loosened but meaningful tolerance.
    assert jnp.allclose(y.astype(jnp.float32), y_ref, atol=5e-3, rtol=5e-2), (
        f"mismatch vs reference, max abs err = {max_err}")

    print("KERNEL_OK")
</pallas_src>

<mosaic_0001>
module attributes {stable_mosaic.version = 11 : i64} {
  func.func @_cheby_kan_kernel(%arg0: i32, %arg1: memref<256x32xf32, #tpu.memory_space<vmem>>, %arg2: memref<128x16xbf16, #tpu.memory_space<vmem>>, %arg3: memref<1x16xf32, #tpu.memory_space<vmem>>, %arg4: memref<256x16xf32, #tpu.memory_space<vmem>>, %arg5: memref<256x128xbf16, #tpu.memory_space<vmem>>) attributes {dimension_semantics = [#tpu.dimension_semantics<parallel>], iteration_bounds = array<i64: 1>, scalar_prefetch = 0 : i64, scratch_operands = 1 : i64, tpu.core_type = #tpu.core_type<tc>, window_params = [{transform_indices = @transform_0, window_bounds = array<i64: 256, 32>}, {pipeline_mode = #tpu.pipeline_mode<synchronous>, transform_indices = @transform_1, window_bounds = array<i64: 128, 16>}, {pipeline_mode = #tpu.pipeline_mode<synchronous>, transform_indices = @transform_2, window_bounds = array<i64: 1, 16>}, {transform_indices = @transform_3, window_bounds = array<i64: 256, 16>}]} {
    %c0 = arith.constant 0 : index
    %c0_0 = arith.constant 0 : index
    %0 = vector.load %arg1[%c0, %c0_0] : memref<256x32xf32, #tpu.memory_space<vmem>>, vector<256x32xf32>
    %1 = math.tanh %0 : vector<256x32xf32>
    %cst = arith.constant 2.000000e+00 : f32
    %2 = vector.broadcast %cst : f32 to vector<256x32xf32>
    %3 = arith.mulf %2, %1 : vector<256x32xf32>
    %4 = arith.truncf %1 : vector<256x32xf32> to vector<256x32xbf16>
    %c0_1 = arith.constant 0 : index
    %c0_2 = arith.constant 0 : index
    %5 = vector.load %arg5[%c0_1, %c0_2] : memref<256x128xbf16, #tpu.memory_space<vmem>>, vector<256x32xbf16>
    tpu.vector_store %arg5[%c0_1, %c0_2], %4 {strides = array<i32>} : memref<256x128xbf16, #tpu.memory_space<vmem>>, vector<256x32xbf16>,
    %cst_3 = arith.constant 1.000000e+00 : f32
    %6 = vector.broadcast %cst_3 : f32 to vector<256x32xf32>
    %7 = arith.mulf %3, %1 : vector<256x32xf32>
    %8 = arith.subf %7, %6 : vector<256x32xf32>
    %9 = arith.truncf %8 : vector<256x32xf32> to vector<256x32xbf16>
    %c0_4 = arith.constant 0 : index
    %c32 = arith.constant 32 : index
    %10 = vector.load %arg5[%c0_4, %c32] : memref<256x128xbf16, #tpu.memory_space<vmem>>, vector<256x32xbf16>
    tpu.vector_store %arg5[%c0_4, %c32], %9 {strides = array<i32>} : memref<256x128xbf16, #tpu.memory_space<vmem>>, vector<256x32xbf16>,
    %11 = arith.mulf %3, %8 : vector<256x32xf32>
    %12 = arith.subf %11, %1 : vector<256x32xf32>
    %13 = arith.truncf %12 : vector<256x32xf32> to vector<256x32xbf16>
    %c0_5 = arith.constant 0 : index
    %c64 = arith.constant 64 : index
    %14 = vector.load %arg5[%c0_5, %c64] : memref<256x128xbf16, #tpu.memory_space<vmem>>, vector<256x32xbf16>
    tpu.vector_store %arg5[%c0_5, %c64], %13 {strides = array<i32>} : memref<256x128xbf16, #tpu.memory_space<vmem>>, vector<256x32xbf16>,
    %15 = arith.mulf %3, %12 : vector<256x32xf32>
    %16 = arith.subf %15, %8 : vector<256x32xf32>
    %17 = arith.truncf %16 : vector<256x32xf32> to vector<256x32xbf16>
    %c0_6 = arith.constant 0 : index
    %c96 = arith.constant 96 : index
    %18 = vector.load %arg5[%c0_6, %c96] : memref<256x128xbf16, #tpu.memory_space<vmem>>, vector<256x32xbf16>
    tpu.vector_store %arg5[%c0_6, %c96], %17 {strides = array<i32>} : memref<256x128xbf16, #tpu.memory_space<vmem>>, vector<256x32xbf16>,
    %c0_7 = arith.constant 0 : index
    %c0_8 = arith.constant 0 : index
    %19 = vector.load %arg5[%c0_7, %c0_8] : memref<256x128xbf16, #tpu.memory_space<vmem>>, vector<256x128xbf16>
    %c0_9 = arith.constant 0 : index
    %c0_10 = arith.constant 0 : index
    %20 = vector.load %arg2[%c0_9, %c0_10] : memref<128x16xbf16, #tpu.memory_space<vmem>>, vector<128x16xbf16>
    %cst_11 = arith.constant dense<0.000000e+00> : vector<256x16xf32>
    %21 = tpu.matmul %19, %20, %cst_11 {dimension_numbers = #tpu.dot_dimension_numbers<[1], [0], [0], [1], [0, 0, 1, 1], [], []>} : vector<256x128xbf16>, vector<128x16xbf16>, vector<256x16xf32> -> vector<256x16xf32>
    %c0_12 = arith.constant 0 : index
    %c0_13 = arith.constant 0 : index
    %22 = vector.load %arg3[%c0_12, %c0_13] : memref<1x16xf32, #tpu.memory_space<vmem>>, vector<1x16xf32>
    %23 = vector.broadcast %22 : vector<1x16xf32> to vector<256x16xf32>
    %24 = arith.addf %21, %23 : vector<256x16xf32>
    %c0_14 = arith.constant 0 : index
    %c0_15 = arith.constant 0 : index
    %25 = vector.load %arg4[%c0_14, %c0_15] : memref<256x16xf32, #tpu.memory_space<vmem>>, vector<256x16xf32>
    tpu.vector_store %arg4[%c0_14, %c0_15], %24 {strides = array<i32>} : memref<256x16xf32, #tpu.memory_space<vmem>>, vector<256x16xf32>,
    return
  }
  func.func @transform_0(%arg0: i32) -> (i32, i32) {
    %c0_i32 = arith.constant 0 : i32
    %c0_i32_0 = arith.constant 0 : i32
    return %arg0, %c0_i32 : i32, i32
  }
  func.func @transform_1(%arg0: i32) -> (i32, i32) {
    %c0_i32 = arith.constant 0 : i32
    %c0_i32_0 = arith.constant 0 : i32
    %c0_i32_1 = arith.constant 0 : i32
    return %c0_i32, %c0_i32_0 : i32, i32
  }
  func.func @transform_2(%arg0: i32) -> (i32, i32) {
    %c0_i32 = arith.constant 0 : i32
    %c0_i32_0 = arith.constant 0 : i32
    %c0_i32_1 = arith.constant 0 : i32
    return %c0_i32, %c0_i32_0 : i32, i32
  }
  func.func @transform_3(%arg0: i32) -> (i32, i32) {
    %c0_i32 = arith.constant 0 : i32
    %c0_i32_0 = arith.constant 0 : i32
    return %arg0, %c0_i32 : i32, i32
  }
}

module attributes {stable_mosaic.version = 11 : i64} {
  func.func @_cheby_kan_kernel(%arg0: i32, %arg1: memref<256x32xf32, #tpu.memory_space<vmem>>, %arg2: memref<128x16xbf16, #tpu.memory_space<vmem>>, %arg3: memref<1x16xf32, #tpu.memory_space<vmem>>, %arg4: memref<256x16xf32, #tpu.memory_space<vmem>>, %arg5: memref<256x128xbf16, #tpu.memory_space<vmem>>) attributes {dimension_semantics = [#tpu.dimension_semantics<parallel>], iteration_bounds = array<i64: 1>, scalar_prefetch = 0 : i64, scratch_operands = 1 : i64, tpu.core_type = #tpu.core_type<tc>, window_params = [{transform_indices = @transform_0, window_bounds = array<i64: 256, 32>}, {pipeline_mode = #tpu.pipeline_mode<synchronous>, transform_indices = @transform_1, window_bounds = array<i64: 128, 16>}, {pipeline_mode = #tpu.pipeline_mode<synchronous>, transform_indices = @transform_2, window_bounds = array<i64: 1, 16>}, {transform_indices = @transform_3, window_bounds = array<i64: 256, 16>}]} {
    %c0 = arith.constant 0 : index
    %c0_0 = arith.constant 0 : index
    %0 = vector.load %arg1[%c0, %c0_0] : memref<256x32xf32, #tpu.memory_space<vmem>>, vector<256x32xf32>
    %1 = math.tanh %0 : vector<256x32xf32>
    %cst = arith.constant 2.000000e+00 : f32
    %2 = vector.broadcast %cst : f32 to vector<256x32xf32>
    %3 = arith.mulf %2, %1 : vector<256x32xf32>
    %4 = arith.truncf %1 : vector<256x32xf32> to vector<256x32xbf16>
    %c0_1 = arith.constant 0 : index
    %c0_2 = arith.constant 0 : index
    %5 = vector.load %arg5[%c0_1, %c0_2] : memref<256x128xbf16, #tpu.memory_space<vmem>>, vector<256x32xbf16>
    tpu.vector_store %arg5[%c0_1, %c0_2], %4 {strides = array<i32>} : memref<256x128xbf16, #tpu.memory_space<vmem>>, vector<256x32xbf16>,
    %cst_3 = arith.constant 1.000000e+00 : f32
    %6 = vector.broadcast %cst_3 : f32 to vector<256x32xf32>
    %7 = arith.mulf %3, %1 : vector<256x32xf32>
    %8 = arith.subf %7, %6 : vector<256x32xf32>
    %9 = arith.truncf %8 : vector<256x32xf32> to vector<256x32xbf16>
    %c0_4 = arith.constant 0 : index
    %c32 = arith.constant 32 : index
    %10 = vector.load %arg5[%c0_4, %c32] : memref<256x128xbf16, #tpu.memory_space<vmem>>, vector<256x32xbf16>
    tpu.vector_store %arg5[%c0_4, %c32], %9 {strides = array<i32>} : memref<256x128xbf16, #tpu.memory_space<vmem>>, vector<256x32xbf16>,
    %11 = arith.mulf %3, %8 : vector<256x32xf32>
    %12 = arith.subf %11, %1 : vector<256x32xf32>
    %13 = arith.truncf %12 : vector<256x32xf32> to vector<256x32xbf16>
    %c0_5 = arith.constant 0 : index
    %c64 = arith.constant 64 : index
    %14 = vector.load %arg5[%c0_5, %c64] : memref<256x128xbf16, #tpu.memory_space<vmem>>, vector<256x32xbf16>
    tpu.vector_store %arg5[%c0_5, %c64], %13 {strides = array<i32>} : memref<256x128xbf16, #tpu.memory_space<vmem>>, vector<256x32xbf16>,
    %15 = arith.mulf %3, %12 : vector<256x32xf32>
    %16 = arith.subf %15, %8 : vector<256x32xf32>
    %17 = arith.truncf %16 : vector<256x32xf32> to vector<256x32xbf16>
    %c0_6 = arith.constant 0 : index
    %c96 = arith.constant 96 : index
    %18 = vector.load %arg5[%c0_6, %c96] : memref<256x128xbf16, #tpu.memory_space<vmem>>, vector<256x32xbf16>
    tpu.vector_store %arg5[%c0_6, %c96], %17 {strides = array<i32>} : memref<256x128xbf16, #tpu.memory_space<vmem>>, vector<256x32xbf16>,
    %c0_7 = arith.constant 0 : index
    %c0_8 = arith.constant 0 : index
    %19 = vector.load %arg5[%c0_7, %c0_8] : memref<256x128xbf16, #tpu.memory_space<vmem>>, vector<256x128xbf16>
    %c0_9 = arith.constant 0 : index
    %c0_10 = arith.constant 0 : index
    %20 = vector.load %arg2[%c0_9, %c0_10] : memref<128x16xbf16, #tpu.memory_space<vmem>>, vector<128x16xbf16>
    %cst_11 = arith.constant dense<0.000000e+00> : vector<256x16xf32>
    %21 = tpu.matmul %19, %20, %cst_11 {dimension_numbers = #tpu.dot_dimension_numbers<[1], [0], [0], [1], [0, 0, 1, 1], [], []>} : vector<256x128xbf16>, vector<128x16xbf16>, vector<256x16xf32> -> vector<256x16xf32>
    %c0_12 = arith.constant 0 : index
    %c0_13 = arith.constant 0 : index
    %22 = vector.load %arg3[%c0_12, %c0_13] : memref<1x16xf32, #tpu.memory_space<vmem>>, vector<1x16xf32>
    %23 = vector.broadcast %22 : vector<1x16xf32> to vector<256x16xf32>
    %24 = arith.addf %21, %23 : vector<256x16xf32>
    %c0_14 = arith.constant 0 : index
    %c0_15 = arith.constant 0 : index
    %25 = vector.load %arg4[%c0_14, %c0_15] : memref<256x16xf32, #tpu.memory_space<vmem>>, vector<256x16xf32>
    tpu.vector_store %arg4[%c0_14, %c0_15], %24 {strides = array<i32>} : memref<256x16xf32, #tpu.memory_space<vmem>>, vector<256x16xf32>,
    return
  }
  func.func @transform_0(%arg0: i32) -> (i32, i32) {
    %c0_i32 = arith.constant 0 : i32
    %c0_i32_0 = arith.constant 0 : i32
    return %arg0, %c0_i32 : i32, i32
  }
  func.func @transform_1(%arg0: i32) -> (i32, i32) {
    %c0_i32 = arith.constant 0 : i32
    %c0_i32_0 = arith.constant 0 : i32
    %c0_i32_1 = arith.constant 0 : i32
    return %c0_i32, %c0_i32_0 : i32, i32
  }
  func.func @transform_2(%arg0: i32) -> (i32, i32) {
    %c0_i32 = arith.constant 0 : i32
    %c0_i32_0 = arith.constant 0 : i32
    %c0_i32_1 = arith.constant 0 : i32
    return %c0_i32, %c0_i32_0 : i32, i32
  }
  func.func @transform_3(%arg0: i32) -> (i32, i32) {
    %c0_i32 = arith.constant 0 : i32
    %c0_i32_0 = arith.constant 0 : i32
    return %arg0, %c0_i32 : i32, i32
  }
}

</mosaic_0001>

<llo_original>
// kernel: tpu_custom_call.1
$region0: #{tpu_custom_call.1}
  #allocation0 [shape = 'u32[]', space=smem, size = 0x4, offset = 0x4, fixed_abs, tag = 'smem constant byte address 0x4 - core index']
  #allocation1 [shape = 'u32[144,128]{1,0:T(1,128)}', space=vmem, size = 0x12000, scoped, tag = 'internal scratch']
  #allocation2 [shape = 'bf16[256,128]{1,0:T(16,128)(2,1)}', space=vmem, size = 0x10000, scoped, tag = 'scratch operand']
  %s0 = inlined_call_operand.vmem [shape: f32[256,32], index: 0, kind: input, shape index: {}]
  %s1 = inlined_call_operand.vmem [shape: bf16[128,16], index: 1, kind: input, shape index: {}]
  %s2 = inlined_call_operand.vmem [shape: f32[1,16], index: 2, kind: input, shape index: {}]
  %s3 = inlined_call_operand.vmem [shape: f32[256,16], index: 3, kind: output, shape index: {}]
  %s4 = sld [smem:[#allocation0]]
  $region22: #{tpu_custom_call.1} parent=0
    _
  %s6 = ssub.s32 1, %s4
  %s7 = scalar_select 0, %s6, %s4
  // Predicated region
  $region2: #{tpu_custom_call.1} parent=0 // pred_check
    _
  $region3: #{tpu_custom_call.1} parent=0 // pred_check_branch
    %9 = sbr.rel (0) target = $region5
  $region4: #{tpu_custom_call.1} parent=0 // pred_region
    _
  $region5: #{tpu_custom_call.1} parent=0 // pred_fallthru
    _
  // Predicated region
  $region6: #{tpu_custom_call.1} parent=0 // pred_check
    _
  $region7: #{tpu_custom_call.1} parent=0 // pred_check_branch
    %11 = sbr.rel (0) target = $region9
  $region8: #{tpu_custom_call.1} parent=0 // pred_region
    _
  $region9: #{tpu_custom_call.1} parent=0 // pred_fallthru
    _
  // Predicated region
  $region10: #{tpu_custom_call.1} parent=0 // pred_check
    _
  $region11: #{tpu_custom_call.1} parent=0 // pred_check_branch
    %13 = sbr.rel (0) target = $region13
  $region12: #{tpu_custom_call.1} parent=0 // pred_region
    _
  $region13: #{tpu_custom_call.1} parent=0 // pred_fallthru
    _
  %v15 = vld [vmem:[%s0] sm:$0xff]
  %v16 = vld [vmem:[%s0 + $0x8] sm:$0xff]
  %v17 = vld [vmem:[%s0 + $0x10] sm:$0xff]
  %v18 = vld [vmem:[%s0 + $0x18] sm:$0xff]
  %v19 = vld [vmem:[%s0 + $0x20] sm:$0xff]
  %v20 = vld [vmem:[%s0 + $0x28] sm:$0xff]
  %v21 = vld [vmem:[%s0 + $0x30] sm:$0xff]
  %v22 = vld [vmem:[%s0 + $0x38] sm:$0xff]
  %v23 = vld [vmem:[%s0 + $0x40] sm:$0xff]
  %v24 = vld [vmem:[%s0 + $0x48] sm:$0xff]
  %v25 = vld [vmem:[%s0 + $0x50] sm:$0xff]
  %v26 = vld [vmem:[%s0 + $0x58] sm:$0xff]
  %v27 = vld [vmem:[%s0 + $0x60] sm:$0xff]
  %v28 = vld [vmem:[%s0 + $0x68] sm:$0xff]
  %v29 = vld [vmem:[%s0 + $0x70] sm:$0xff]
  %v30 = vld [vmem:[%s0 + $0x78] sm:$0xff]
  %v31 = vld [vmem:[%s0 + $0x80] sm:$0xff]
  %v32 = vld [vmem:[%s0 + $0x88] sm:$0xff]
  %v33 = vld [vmem:[%s0 + $0x90] sm:$0xff]
  %v34 = vld [vmem:[%s0 + $0x98] sm:$0xff]
  %v35 = vld [vmem:[%s0 + $0xa0] sm:$0xff]
  %v36 = vld [vmem:[%s0 + $0xa8] sm:$0xff]
  %v37 = vld [vmem:[%s0 + $0xb0] sm:$0xff]
  %v38 = vld [vmem:[%s0 + $0xb8] sm:$0xff]
  %v39 = vld [vmem:[%s0 + $0xc0] sm:$0xff]
  %v40 = vld [vmem:[%s0 + $0xc8] sm:$0xff]
  %v41 = vld [vmem:[%s0 + $0xd0] sm:$0xff]
  %v42 = vld [vmem:[%s0 + $0xd8] sm:$0xff]
  %v43 = vld [vmem:[%s0 + $0xe0] sm:$0xff]
  %v44 = vld [vmem:[%s0 + $0xe8] sm:$0xff]
  %v45 = vld [vmem:[%s0 + $0xf0] sm:$0xff]
  %v46 = vld [vmem:[%s0 + $0xf8] sm:$0xff]
  %v47 = vtanh.pop %v15
  %v48 = vtanh.pop %v16
  %v49 = vtanh.pop %v17
  %v50 = vtanh.pop %v18
  %v51 = vtanh.pop %v19
  %v52 = vtanh.pop %v20
  %v53 = vtanh.pop %v21
  %v54 = vtanh.pop %v22
  %v55 = vtanh.pop %v23
  %v56 = vtanh.pop %v24
  %v57 = vtanh.pop %v25
  %v58 = vtanh.pop %v26
  %v59 = vtanh.pop %v27
  %v60 = vtanh.pop %v28
  %v61 = vtanh.pop %v29
  %v62 = vtanh.pop %v30
  %v63 = vtanh.pop %v31
  %v64 = vtanh.pop %v32
  %v65 = vtanh.pop %v33
  %v66 = vtanh.pop %v34
  %v67 = vtanh.pop %v35
  %v68 = vtanh.pop %v36
  %v69 = vtanh.pop %v37
  %v70 = vtanh.pop %v38
  %v71 = vtanh.pop %v39
  %v72 = vtanh.pop %v40
  %v73 = vtanh.pop %v41
  %v74 = vtanh.pop %v42
  %v75 = vtanh.pop %v43
  %v76 = vtanh.pop %v44
  %v77 = vtanh.pop %v45
  %v78 = vtanh.pop %v46
  %v79 = vmul.f32 %v47, 2.0
  %v80 = vmul.f32 %v48, 2.0
  %v81 = vmul.f32 %v49, 2.0
  %v82 = vmul.f32 %v50, 2.0
  %v83 = vmul.f32 %v51, 2.0
  %v84 = vmul.f32 %v52, 2.0
  %v85 = vmul.f32 %v53, 2.0
  %v86 = vmul.f32 %v54, 2.0
  %v87 = vmul.f32 %v55, 2.0
  %v88 = vmul.f32 %v56, 2.0
  %v89 = vmul.f32 %v57, 2.0
  %v90 = vmul.f32 %v58, 2.0
  %v91 = vmul.f32 %v59, 2.0
  %v92 = vmul.f32 %v60, 2.0
  %v93 = vmul.f32 %v61, 2.0
  %v94 = vmul.f32 %v62, 2.0
  %v95 = vmul.f32 %v63, 2.0
  %v96 = vmul.f32 %v64, 2.0
  %v97 = vmul.f32 %v65, 2.0
  %v98 = vmul.f32 %v66, 2.0
  %v99 = vmul.f32 %v67, 2.0
  %v100 = vmul.f32 %v68, 2.0
  %v101 = vmul.f32 %v69, 2.0
  %v102 = vmul.f32 %v70, 2.0
  %v103 = vmul.f32 %v71, 2.0
  %v104 = vmul.f32 %v72, 2.0
  %v105 = vmul.f32 %v73, 2.0
  %v106 = vmul.f32 %v74, 2.0
  %v107 = vmul.f32 %v75, 2.0
  %v108 = vmul.f32 %v76, 2.0
  %v109 = vmul.f32 %v77, 2.0
  %v110 = vmul.f32 %v78, 2.0
  %v111 = vpack.c.bf16 %v48, %v47
  %v112 = vpack.c.bf16 %v50, %v49
  %v113 = vpack.c.bf16 %v52, %v51
  %v114 = vpack.c.bf16 %v54, %v53
  %v115 = vpack.c.bf16 %v56, %v55
  %v116 = vpack.c.bf16 %v58, %v57
  %v117 = vpack.c.bf16 %v60, %v59
  %v118 = vpack.c.bf16 %v62, %v61
  %v119 = vpack.c.bf16 %v64, %v63
  %v120 = vpack.c.bf16 %v66, %v65
  %v121 = vpack.c.bf16 %v68, %v67
  %v122 = vpack.c.bf16 %v70, %v69
  %v123 = vpack.c.bf16 %v72, %v71
  %v124 = vpack.c.bf16 %v74, %v73
  %v125 = vpack.c.bf16 %v76, %v75
  %v126 = vpack.c.bf16 %v78, %v77
  %vm127 = vcmask 261120
  %128 = vst.msk [vmem:[#allocation2] sm:$0xff] %vm127, %v111
  %129 = vst.msk [vmem:[#allocation2 + $0x8] sm:$0xff] %vm127, %v112
  %130 = vst.msk [vmem:[#allocation2 + $0x10] sm:$0xff] %vm127, %v113
  %131 = vst.msk [vmem:[#allocation2 + $0x18] sm:$0xff] %vm127, %v114
  %132 = vst.msk [vmem:[#allocation2 + $0x20] sm:$0xff] %vm127, %v115
  %133 = vst.msk [vmem:[#allocation2 + $0x28] sm:$0xff] %vm127, %v116
  %134 = vst.msk [vmem:[#allocation2 + $0x30] sm:$0xff] %vm127, %v117
  %135 = vst.msk [vmem:[#allocation2 + $0x38] sm:$0xff] %vm127, %v118
  %136 = vst.msk [vmem:[#allocation2 + $0x40] sm:$0xff] %vm127, %v119
  %137 = vst.msk [vmem:[#allocation2 + $0x48] sm:$0xff] %vm127, %v120
  %138 = vst.msk [vmem:[#allocation2 + $0x50] sm:$0xff] %vm127, %v121
  %139 = vst.msk [vmem:[#allocation2 + $0x58] sm:$0xff] %vm127, %v122
  %140 = vst.msk [vmem:[#allocation2 + $0x60] sm:$0xff] %vm127, %v123
  %141 = vst.msk [vmem:[#allocation2 + $0x68] sm:$0xff] %vm127, %v124
  %142 = vst.msk [vmem:[#allocation2 + $0x70] sm:$0xff] %vm127, %v125
  %143 = vst.msk [vmem:[#allocation2 + $0x78] sm:$0xff] %vm127, %v126
  %v144 = vmul.f32 %v79, %v47
  %v145 = vmul.f32 %v80, %v48
  %v146 = vmul.f32 %v81, %v49
  %v147 = vmul.f32 %v82, %v50
  %v148 = vmul.f32 %v83, %v51
  %v149 = vmul.f32 %v84, %v52
  %v150 = vmul.f32 %v85, %v53
  %v151 = vmul.f32 %v86, %v54
  %v152 = vmul.f32 %v87, %v55
  %v153 = vmul.f32 %v88, %v56
  %v154 = vmul.f32 %v89, %v57
  %v155 = vmul.f32 %v90, %v58
  %v156 = vmul.f32 %v91, %v59
  %v157 = vmul.f32 %v92, %v60
  %v158 = vmul.f32 %v93, %v61
  %v159 = vmul.f32 %v94, %v62
  %v160 = vmul.f32 %v95, %v63
  %v161 = vmul.f32 %v96, %v64
  %v162 = vmul.f32 %v97, %v65
  %v163 = vmul.f32 %v98, %v66
  %v164 = vmul.f32 %v99, %v67
  %v165 = vmul.f32 %v100, %v68
  %v166 = vmul.f32 %v101, %v69
  %v167 = vmul.f32 %v102, %v70
  %v168 = vmul.f32 %v103, %v71
  %v169 = vmul.f32 %v104, %v72
  %v170 = vmul.f32 %v105, %v73
  %v171 = vmul.f32 %v106, %v74
  %v172 = vmul.f32 %v107, %v75
  %v173 = vmul.f32 %v108, %v76
  %v174 = vmul.f32 %v109, %v77
  %v175 = vmul.f32 %v110, %v78
  %v176 = vsub.f32 %v144, 1.0
  %v177 = vsub.f32 %v145, 1.0
  %v178 = vsub.f32 %v146, 1.0
  %v179 = vsub.f32 %v147, 1.0
  %v180 = vsub.f32 %v148, 1.0
  %v181 = vsub.f32 %v149, 1.0
  %v182 = vsub.f32 %v150, 1.0
  %v183 = vsub.f32 %v151, 1.0
  %v184 = vsub.f32 %v152, 1.0
  %v185 = vsub.f32 %v153, 1.0
  %v186 = vsub.f32 %v154, 1.0
  %v187 = vsub.f32 %v155, 1.0
  %v188 = vsub.f32 %v156, 1.0
  %v189 = vsub.f32 %v157, 1.0
  %v190 = vsub.f32 %v158, 1.0
  %v191 = vsub.f32 %v159, 1.0
  %v192 = vsub.f32 %v160, 1.0
  %v193 = vsub.f32 %v161, 1.0
  %v194 = vsub.f32 %v162, 1.0
  %v195 = vsub.f32 %v163, 1.0
  %v196 = vsub.f32 %v164, 1.0
  %v197 = vsub.f32 %v165, 1.0
  %v198 = vsub.f32 %v166, 1.0
  %v199 = vsub.f32 %v167, 1.0
  %v200 = vsub.f32 %v168, 1.0
  %v201 = vsub.f32 %v169, 1.0
  %v202 = vsub.f32 %v170, 1.0
  %v203 = vsub.f32 %v171, 1.0
  %v204 = vsub.f32 %v172, 1.0
  %v205 = vsub.f32 %v173, 1.0
  %v206 = vsub.f32 %v174, 1.0
  %v207 = vsub.f32 %v175, 1.0
  %v208 = vpack.c.bf16 %v177, %v176
  %v209 = vpack.c.bf16 %v179, %v178
  %v210 = vpack.c.bf16 %v181, %v180
  %v211 = vpack.c.bf16 %v183, %v182
  %v212 = vpack.c.bf16 %v185, %v184
  %v213 = vpack.c.bf16 %v187, %v186
  %v214 = vpack.c.bf16 %v189, %v188
  %v215 = vpack.c.bf16 %v191, %v190
  %v216 = vpack.c.bf16 %v193, %v192
  %v217 = vpack.c.bf16 %v195, %v194
  %v218 = vpack.c.bf16 %v197, %v196
  %v219 = vpack.c.bf16 %v199, %v198
  %v220 = vpack.c.bf16 %v201, %v200
  %v221 = vpack.c.bf16 %v203, %v202
  %v222 = vpack.c.bf16 %v205, %v204
  %v223 = vpack.c.bf16 %v207, %v206
  %240 = vrot.lane.b32.xlu0 %v208, 32
  %v241 = vpop.permute.xlu0 %240
  %242 = vrot.lane.b32.xlu0 %v209, 32
  %v243 = vpop.permute.xlu0 %242
  %244 = vrot.lane.b32.xlu0 %v210, 32
  %v245 = vpop.permute.xlu0 %244
  %246 = vrot.lane.b32.xlu0 %v211, 32
  %v247 = vpop.permute.xlu0 %246
  %248 = vrot.lane.b32.xlu0 %v212, 32
  %v249 = vpop.permute.xlu0 %248
  %250 = vrot.lane.b32.xlu0 %v213, 32
  %v251 = vpop.permute.xlu0 %250
  %252 = vrot.lane.b32.xlu0 %v214, 32
  %v253 = vpop.permute.xlu0 %252
  %254 = vrot.lane.b32.xlu0 %v215, 32
  %v255 = vpop.permute.xlu0 %254
  %256 = vrot.lane.b32.xlu0 %v216, 32
  %v257 = vpop.permute.xlu0 %256
  %258 = vrot.lane.b32.xlu0 %v217, 32
  %v259 = vpop.permute.xlu0 %258
  %260 = vrot.lane.b32.xlu0 %v218, 32
  %v261 = vpop.permute.xlu0 %260
  %262 = vrot.lane.b32.xlu0 %v219, 32
  %v263 = vpop.permute.xlu0 %262
  %264 = vrot.lane.b32.xlu0 %v220, 32
  %v265 = vpop.permute.xlu0 %264
  %266 = vrot.lane.b32.xlu0 %v221, 32
  %v267 = vpop.permute.xlu0 %266
  %268 = vrot.lane.b32.xlu0 %v222, 32
  %v269 = vpop.permute.xlu0 %268
  %270 = vrot.lane.b32.xlu0 %v223, 32
  %v271 = vpop.permute.xlu0 %270
  %vm288 = vcmask 523520
  %289 = vst.msk [vmem:[#allocation2] sm:$0xff] %vm288, %v241
  %290 = vst.msk [vmem:[#allocation2 + $0x8] sm:$0xff] %vm288, %v243
  %291 = vst.msk [vmem:[#allocation2 + $0x10] sm:$0xff] %vm288, %v245
  %292 = vst.msk [vmem:[#allocation2 + $0x18] sm:$0xff] %vm288, %v247
  %293 = vst.msk [vmem:[#allocation2 + $0x20] sm:$0xff] %vm288, %v249
  %294 = vst.msk [vmem:[#allocation2 + $0x28] sm:$0xff] %vm288, %v251
  %295 = vst.msk [vmem:[#allocation2 + $0x30] sm:$0xff] %vm288, %v253
  %296 = vst.msk [vmem:[#allocation2 + $0x38] sm:$0xff] %vm288, %v255
  %297 = vst.msk [vmem:[#allocation2 + $0x40] sm:$0xff] %vm288, %v257
  %298 = vst.msk [vmem:[#allocation2 + $0x48] sm:$0xff] %vm288, %v259
  %299 = vst.msk [vmem:[#allocation2 + $0x50] sm:$0xff] %vm288, %v261
  %300 = vst.msk [vmem:[#allocation2 + $0x58] sm:$0xff] %vm288, %v263
  %301 = vst.msk [vmem:[#allocation2 + $0x60] sm:$0xff] %vm288, %v265
  %302 = vst.msk [vmem:[#allocation2 + $0x68] sm:$0xff] %vm288, %v267
  %303 = vst.msk [vmem:[#allocation2 + $0x70] sm:$0xff] %vm288, %v269
  %304 = vst.msk [vmem:[#allocation2 + $0x78] sm:$0xff] %vm288, %v271
  %v305 = vmul.f32 %v79, %v176
  %v306 = vmul.f32 %v80, %v177
  %v307 = vmul.f32 %v81, %v178
  %v308 = vmul.f32 %v82, %v179
  %v309 = vmul.f32 %v83, %v180
  %v310 = vmul.f32 %v84, %v181
  %v311 = vmul.f32 %v85, %v182
  %v312 = vmul.f32 %v86, %v183
  %v313 = vmul.f32 %v87, %v184
  %v314 = vmul.f32 %v88, %v185
  %v315 = vmul.f32 %v89, %v186
  %v316 = vmul.f32 %v90, %v187
  %v317 = vmul.f32 %v91, %v188
  %v318 = vmul.f32 %v92, %v189
  %v319 = vmul.f32 %v93, %v190
  %v320 = vmul.f32 %v94, %v191
  %v321 = vmul.f32 %v95, %v192
  %v322 = vmul.f32 %v96, %v193
  %v323 = vmul.f32 %v97, %v194
  %v324 = vmul.f32 %v98, %v195
  %v325 = vmul.f32 %v99, %v196
  %v326 = vmul.f32 %v100, %v197
  %v327 = vmul.f32 %v101, %v198
  %v328 = vmul.f32 %v102, %v199
  %v329 = vmul.f32 %v103, %v200
  %v330 = vmul.f32 %v104, %v201
  %v331 = vmul.f32 %v105, %v202
  %v332 = vmul.f32 %v106, %v203
  %v333 = vmul.f32 %v107, %v204
  %v334 = vmul.f32 %v108, %v205
  %v335 = vmul.f32 %v109, %v206
  %v336 = vmul.f32 %v110, %v207
  %v337 = vsub.f32 %v305, %v47
  %v338 = vsub.f32 %v306, %v48
  %v339 = vsub.f32 %v307, %v49
  %v340 = vsub.f32 %v308, %v50
  %v341 = vsub.f32 %v309, %v51
  %v342 = vsub.f32 %v310, %v52
  %v343 = vsub.f32 %v311, %v53
  %v344 = vsub.f32 %v312, %v54
  %v345 = vsub.f32 %v313, %v55
  %v346 = vsub.f32 %v314, %v56
  %v347 = vsub.f32 %v315, %v57
  %v348 = vsub.f32 %v316, %v58
  %v349 = vsub.f32 %v317, %v59
  %v350 = vsub.f32 %v318, %v60
  %v351 = vsub.f32 %v319, %v61
  %v352 = vsub.f32 %v320, %v62
  %v353 = vsub.f32 %v321, %v63
  %v354 = vsub.f32 %v322, %v64
  %v355 = vsub.f32 %v323, %v65
  %v356 = vsub.f32 %v324, %v66
  %v357 = vsub.f32 %v325, %v67
  %v358 = vsub.f32 %v326, %v68
  %v359 = vsub.f32 %v327, %v69
  %v360 = vsub.f32 %v328, %v70
  %v361 = vsub.f32 %v329, %v71
  %v362 = vsub.f32 %v330, %v72
  %v363 = vsub.f32 %v331, %v73
  %v364 = vsub.f32 %v332, %v74
  %v365 = vsub.f32 %v333, %v75
  %v366 = vsub.f32 %v334, %v76
  %v367 = vsub.f32 %v335, %v77
  %v368 = vsub.f32 %v336, %v78
  %v369 = vpack.c.bf16 %v338, %v337
  %v370 = vpack.c.bf16 %v340, %v339
  %v371 = vpack.c.bf16 %v342, %v341
  %v372 = vpack.c.bf16 %v344, %v343
  %v373 = vpack.c.bf16 %v346, %v345
  %v374 = vpack.c.bf16 %v348, %v347
  %v375 = vpack.c.bf16 %v350, %v349
  %v376 = vpack.c.bf16 %v352, %v351
  %v377 = vpack.c.bf16 %v354, %v353
  %v378 = vpack.c.bf16 %v356, %v355
  %v379 = vpack.c.bf16 %v358, %v357
  %v380 = vpack.c.bf16 %v360, %v359
  %v381 = vpack.c.bf16 %v362, %v361
  %v382 = vpack.c.bf16 %v364, %v363
  %v383 = vpack.c.bf16 %v366, %v365
  %v384 = vpack.c.bf16 %v368, %v367
  %401 = vrot.lane.b32.xlu0 %v369, 64
  %v402 = vpop.permute.xlu0 %401
  %403 = vrot.lane.b32.xlu0 %v370, 64
  %v404 = vpop.permute.xlu0 %403
  %405 = vrot.lane.b32.xlu0 %v371, 64
  %v406 = vpop.permute.xlu0 %405
  %407 = vrot.lane.b32.xlu0 %v372, 64
  %v408 = vpop.permute.xlu0 %407
  %409 = vrot.lane.b32.xlu0 %v373, 64
  %v410 = vpop.permute.xlu0 %409
  %411 = vrot.lane.b32.xlu0 %v374, 64
  %v412 = vpop.permute.xlu0 %411
  %413 = vrot.lane.b32.xlu0 %v375, 64
  %v414 = vpop.permute.xlu0 %413
  %415 = vrot.lane.b32.xlu0 %v376, 64
  %v416 = vpop.permute.xlu0 %415
  %417 = vrot.lane.b32.xlu0 %v377, 64
  %v418 = vpop.permute.xlu0 %417
  %419 = vrot.lane.b32.xlu0 %v378, 64
  %v420 = vpop.permute.xlu0 %419
  %421 = vrot.lane.b32.xlu0 %v379, 64
  %v422 = vpop.permute.xlu0 %421
  %423 = vrot.lane.b32.xlu0 %v380, 64
  %v424 = vpop.permute.xlu0 %423
  %425 = vrot.lane.b32.xlu0 %v381, 64
  %v426 = vpop.permute.xlu0 %425
  %427 = vrot.lane.b32.xlu0 %v382, 64
  %v428 = vpop.permute.xlu0 %427
  %429 = vrot.lane.b32.xlu0 %v383, 64
  %v430 = vpop.permute.xlu0 %429
  %431 = vrot.lane.b32.xlu0 %v384, 64
  %v432 = vpop.permute.xlu0 %431
  %vm449 = vcmask 785920
  %450 = vst.msk [vmem:[#allocation2] sm:$0xff] %vm449, %v402
  %451 = vst.msk [vmem:[#allocation2 + $0x8] sm:$0xff] %vm449, %v404
  %452 = vst.msk [vmem:[#allocation2 + $0x10] sm:$0xff] %vm449, %v406
  %453 = vst.msk [vmem:[#allocation2 + $0x18] sm:$0xff] %vm449, %v408
  %454 = vst.msk [vmem:[#allocation2 + $0x20] sm:$0xff] %vm449, %v410
  %455 = vst.msk [vmem:[#allocation2 + $0x28] sm:$0xff] %vm449, %v412
  %456 = vst.msk [vmem:[#allocation2 + $0x30] sm:$0xff] %vm449, %v414
  %457 = vst.msk [vmem:[#allocation2 + $0x38] sm:$0xff] %vm449, %v416
  %458 = vst.msk [vmem:[#allocation2 + $0x40] sm:$0xff] %vm449, %v418
  %459 = vst.msk [vmem:[#allocation2 + $0x48] sm:$0xff] %vm449, %v420
  %460 = vst.msk [vmem:[#allocation2 + $0x50] sm:$0xff] %vm449, %v422
  %461 = vst.msk [vmem:[#allocation2 + $0x58] sm:$0xff] %vm449, %v424
  %462 = vst.msk [vmem:[#allocation2 + $0x60] sm:$0xff] %vm449, %v426
  %463 = vst.msk [vmem:[#allocation2 + $0x68] sm:$0xff] %vm449, %v428
  %464 = vst.msk [vmem:[#allocation2 + $0x70] sm:$0xff] %vm449, %v430
  %465 = vst.msk [vmem:[#allocation2 + $0x78] sm:$0xff] %vm449, %v432
  %v466 = vmul.f32 %v79, %v337
  %v467 = vmul.f32 %v80, %v338
  %v468 = vmul.f32 %v81, %v339
  %v469 = vmul.f32 %v82, %v340
  %v470 = vmul.f32 %v83, %v341
  %v471 = vmul.f32 %v84, %v342
  %v472 = vmul.f32 %v85, %v343
  %v473 = vmul.f32 %v86, %v344
  %v474 = vmul.f32 %v87, %v345
  %v475 = vmul.f32 %v88, %v346
  %v476 = vmul.f32 %v89, %v347
  %v477 = vmul.f32 %v90, %v348
  %v478 = vmul.f32 %v91, %v349
  %v479 = vmul.f32 %v92, %v350
  %v480 = vmul.f32 %v93, %v351
  %v481 = vmul.f32 %v94, %v352
  %v482 = vmul.f32 %v95, %v353
  %v483 = vmul.f32 %v96, %v354
  %v484 = vmul.f32 %v97, %v355
  %v485 = vmul.f32 %v98, %v356
  %v486 = vmul.f32 %v99, %v357
  %v487 = vmul.f32 %v100, %v358
  %v488 = vmul.f32 %v101, %v359
  %v489 = vmul.f32 %v102, %v360
  %v490 = vmul.f32 %v103, %v361
  %v491 = vmul.f32 %v104, %v362
  %v492 = vmul.f32 %v105, %v363
  %v493 = vmul.f32 %v106, %v364
  %v494 = vmul.f32 %v107, %v365
  %v495 = vmul.f32 %v108, %v366
  %v496 = vmul.f32 %v109, %v367
  %v497 = vmul.f32 %v110, %v368
  %v498 = vsub.f32 %v466, %v176
  %v499 = vsub.f32 %v467, %v177
  %v500 = vsub.f32 %v468, %v178
  %v501 = vsub.f32 %v469, %v179
  %v502 = vsub.f32 %v470, %v180
  %v503 = vsub.f32 %v471, %v181
  %v504 = vsub.f32 %v472, %v182
  %v505 = vsub.f32 %v473, %v183
  %v506 = vsub.f32 %v474, %v184
  %v507 = vsub.f32 %v475, %v185
  %v508 = vsub.f32 %v476, %v186
  %v509 = vsub.f32 %v477, %v187
  %v510 = vsub.f32 %v478, %v188
  %v511 = vsub.f32 %v479, %v189
  %v512 = vsub.f32 %v480, %v190
  %v513 = vsub.f32 %v481, %v191
  %v514 = vsub.f32 %v482, %v192
  %v515 = vsub.f32 %v483, %v193
  %v516 = vsub.f32 %v484, %v194
  %v517 = vsub.f32 %v485, %v195
  %v518 = vsub.f32 %v486, %v196
  %v519 = vsub.f32 %v487, %v197
  %v520 = vsub.f32 %v488, %v198
  %v521 = vsub.f32 %v489, %v199
  %v522 = vsub.f32 %v490, %v200
  %v523 = vsub.f32 %v491, %v201
  %v524 = vsub.f32 %v492, %v202
  %v525 = vsub.f32 %v493, %v203
  %v526 = vsub.f32 %v494, %v204
  %v527 = vsub.f32 %v495, %v205
  %v528 = vsub.f32 %v496, %v206
  %v529 = vsub.f32 %v497, %v207
  %v530 = vpack.c.bf16 %v499, %v498
  %v531 = vpack.c.bf16 %v501, %v500
  %v532 = vpack.c.bf16 %v503, %v502
  %v533 = vpack.c.bf16 %v505, %v504
  %v534 = vpack.c.bf16 %v507, %v506
  %v535 = vpack.c.bf16 %v509, %v508
  %v536 = vpack.c.bf16 %v511, %v510
  %v537 = vpack.c.bf16 %v513, %v512
  %v538 = vpack.c.bf16 %v515, %v514
  %v539 = vpack.c.bf16 %v517, %v516
  %v540 = vpack.c.bf16 %v519, %v518
  %v541 = vpack.c.bf16 %v521, %v520
  %v542 = vpack.c.bf16 %v523, %v522
  %v543 = vpack.c.bf16 %v525, %v524
  %v544 = vpack.c.bf16 %v527, %v526
  %v545 = vpack.c.bf16 %v529, %v528
  %562 = vrot.lane.b32.xlu0 %v530, 96
  %v563 = vpop.permute.xlu0 %562
  %564 = vrot.lane.b32.xlu0 %v531, 96
  %v565 = vpop.permute.xlu0 %564
  %566 = vrot.lane.b32.xlu0 %v532, 96
  %v567 = vpop.permute.xlu0 %566
  %568 = vrot.lane.b32.xlu0 %v533, 96
  %v569 = vpop.permute.xlu0 %568
  %570 = vrot.lane.b32.xlu0 %v534, 96
  %v571 = vpop.permute.xlu0 %570
  %572 = vrot.lane.b32.xlu0 %v535, 96
  %v573 = vpop.permute.xlu0 %572
  %574 = vrot.lane.b32.xlu0 %v536, 96
  %v575 = vpop.permute.xlu0 %574
  %576 = vrot.lane.b32.xlu0 %v537, 96
  %v577 = vpop.permute.xlu0 %576
  %578 = vrot.lane.b32.xlu0 %v538, 96
  %v579 = vpop.permute.xlu0 %578
  %580 = vrot.lane.b32.xlu0 %v539, 96
  %v581 = vpop.permute.xlu0 %580
  %582 = vrot.lane.b32.xlu0 %v540, 96
  %v583 = vpop.permute.xlu0 %582
  %584 = vrot.lane.b32.xlu0 %v541, 96
  %v585 = vpop.permute.xlu0 %584
  %586 = vrot.lane.b32.xlu0 %v542, 96
  %v587 = vpop.permute.xlu0 %586
  %588 = vrot.lane.b32.xlu0 %v543, 96
  %v589 = vpop.permute.xlu0 %588
  %590 = vrot.lane.b32.xlu0 %v544, 96
  %v591 = vpop.permute.xlu0 %590
  %592 = vrot.lane.b32.xlu0 %v545, 96
  %v593 = vpop.permute.xlu0 %592
  %vm610 = vcmask 1048320
  %611 = vst.msk [vmem:[#allocation2] sm:$0xff] %vm610, %v563
  %612 = vst.msk [vmem:[#allocation2 + $0x8] sm:$0xff] %vm610, %v565
  %613 = vst.msk [vmem:[#allocation2 + $0x10] sm:$0xff] %vm610, %v567
  %614 = vst.msk [vmem:[#allocation2 + $0x18] sm:$0xff] %vm610, %v569
  %615 = vst.msk [vmem:[#allocation2 + $0x20] sm:$0xff] %vm610, %v571
  %616 = vst.msk [vmem:[#allocation2 + $0x28] sm:$0xff] %vm610, %v573
  %617 = vst.msk [vmem:[#allocation2 + $0x30] sm:$0xff] %vm610, %v575
  %618 = vst.msk [vmem:[#allocation2 + $0x38] sm:$0xff] %vm610, %v577
  %619 = vst.msk [vmem:[#allocation2 + $0x40] sm:$0xff] %vm610, %v579
  %620 = vst.msk [vmem:[#allocation2 + $0x48] sm:$0xff] %vm610, %v581
  %621 = vst.msk [vmem:[#allocation2 + $0x50] sm:$0xff] %vm610, %v583
  %622 = vst.msk [vmem:[#allocation2 + $0x58] sm:$0xff] %vm610, %v585
  %623 = vst.msk [vmem:[#allocation2 + $0x60] sm:$0xff] %vm610, %v587
  %624 = vst.msk [vmem:[#allocation2 + $0x68] sm:$0xff] %vm610, %v589
  %625 = vst.msk [vmem:[#allocation2 + $0x70] sm:$0xff] %vm610, %v591
  %626 = vst.msk [vmem:[#allocation2 + $0x78] sm:$0xff] %vm610, %v593
  %v627 = vld [vmem:[#allocation2] sm:$0xff]
  %v628 = vld [vmem:[#allocation2 + $0x8] sm:$0xff]
  %v629 = vld [vmem:[#allocation2 + $0x10] sm:$0xff]
  %v630 = vld [vmem:[#allocation2 + $0x18] sm:$0xff]
  %v631 = vld [vmem:[#allocation2 + $0x20] sm:$0xff]
  %v632 = vld [vmem:[#allocation2 + $0x28] sm:$0xff]
  %v633 = vld [vmem:[#allocation2 + $0x30] sm:$0xff]
  %v634 = vld [vmem:[#allocation2 + $0x38] sm:$0xff]
  %v635 = vld [vmem:[#allocation2 + $0x40] sm:$0xff]
  %v636 = vld [vmem:[#allocation2 + $0x48] sm:$0xff]
  %v637 = vld [vmem:[#allocation2 + $0x50] sm:$0xff]
  %v638 = vld [vmem:[#allocation2 + $0x58] sm:$0xff]
  %v639 = vld [vmem:[#allocation2 + $0x60] sm:$0xff]
  %v640 = vld [vmem:[#allocation2 + $0x68] sm:$0xff]
  %v641 = vld [vmem:[#allocation2 + $0x70] sm:$0xff]
  %v642 = vld [vmem:[#allocation2 + $0x78] sm:$0xff]
  %v643 = vld [vmem:[%s1] sm:$0xf]
  %v644 = vld [vmem:[%s1 + $0x4] sm:$0xf]
  %v645 = vld [vmem:[%s1 + $0x8] sm:$0xf]
  %v646 = vld [vmem:[%s1 + $0xc] sm:$0xf]
  %v647 = vld [vmem:[%s1 + $0x10] sm:$0xf]
  %v648 = vld [vmem:[%s1 + $0x14] sm:$0xf]
  %v649 = vld [vmem:[%s1 + $0x18] sm:$0xf]
  %v650 = vld [vmem:[%s1 + $0x1c] sm:$0xf]
  %v651 = vld [vmem:[%s1 + $0x20] sm:$0xf]
  %v652 = vld [vmem:[%s1 + $0x24] sm:$0xf]
  %v653 = vld [vmem:[%s1 + $0x28] sm:$0xf]
  %v654 = vld [vmem:[%s1 + $0x2c] sm:$0xf]
  %v655 = vld [vmem:[%s1 + $0x30] sm:$0xf]
  %v656 = vld [vmem:[%s1 + $0x34] sm:$0xf]
  %v657 = vld [vmem:[%s1 + $0x38] sm:$0xf]
  %v658 = vld [vmem:[%s1 + $0x3c] sm:$0xf]
  %v659 = vld [vmem:[%s2] sm:$0x1]
  %v661 = vlaneseq
  %v662 = vshrl.u32 %v661, 7
  %v663 = vsub.s32 0, %v662
  %v664 = vrot.slane %v659, %v663
  %v682 = vunpack.c.l.b16 %v643
  %v683 = vunpack.c.l.b16 %v644
  %v684 = vunpack.c.l.b16 %v645
  %v685 = vunpack.c.l.b16 %v646
  %v686 = vunpack.c.l.b16 %v647
  %v687 = vunpack.c.l.b16 %v648
  %v688 = vunpack.c.l.b16 %v649
  %v689 = vunpack.c.l.b16 %v650
  %v690 = vunpack.c.l.b16 %v651
  %v691 = vunpack.c.l.b16 %v652
  %v692 = vunpack.c.l.b16 %v653
  %v693 = vunpack.c.l.b16 %v654
  %v694 = vunpack.c.l.b16 %v655
  %v695 = vunpack.c.l.b16 %v656
  %v696 = vunpack.c.l.b16 %v657
  %v697 = vunpack.c.l.b16 %v658
  %v698 = vpack.c.b16 %v683, %v682
  %v699 = vpack.c.b16 %v685, %v684
  %v700 = vpack.c.b16 %v687, %v686
  %v701 = vpack.c.b16 %v689, %v688
  %v702 = vpack.c.b16 %v691, %v690
  %v703 = vpack.c.b16 %v693, %v692
  %v704 = vpack.c.b16 %v695, %v694
  %v705 = vpack.c.b16 %v697, %v696
  %714 = vmatprep.subr.bf16.mxu0 0
  %715 = vmatpush1.bf16.msra.mxu0 %v698
  %716 = vmatprep.subr.bf16.mxu0 0
  %717 = vmatpush1.bf16.msra.mxu0 %v699
  %718 = vmatprep.subr.bf16.mxu0 0
  %719 = vmatpush1.bf16.msra.mxu0 %v700
  %720 = vmatprep.subr.bf16.mxu0 0
  %721 = vmatpush1.bf16.msra.mxu0 %v701
  %722 = vmatprep.subr.bf16.mxu0 0
  %723 = vmatpush1.bf16.msra.mxu0 %v702
  %724 = vmatprep.subr.bf16.mxu0 0
  %725 = vmatpush1.bf16.msra.mxu0 %v703
  %726 = vmatprep.subr.bf16.mxu0 0
  %727 = vmatpush1.bf16.msra.mxu0 %v704
  %728 = vmatprep.subr.bf16.mxu0 0
  %729 = vmatpush1.bf16.msra.mxu0 %v705
  %730 = vmatprep.subr.bf16.mxu0 0
  %731 = vmatpush1.bf16.msra.mxu0 0
  %732 = vmatprep.subr.bf16.mxu0 0
  %733 = vmatpush1.bf16.msra.mxu0 0
  %734 = vmatprep.subr.bf16.mxu0 0
  %735 = vmatpush1.bf16.msra.mxu0 0
  %736 = vmatprep.subr.bf16.mxu0 0
  %737 = vmatpush1.bf16.msra.mxu0 0
  %738 = vmatprep.subr.bf16.mxu0 0
  %739 = vmatpush1.bf16.msra.mxu0 0
  %740 = vmatprep.subr.bf16.mxu0 0
  %741 = vmatpush1.bf16.msra.mxu0 0
  %742 = vmatprep.subr.bf16.mxu0 0
  %743 = vmatpush1.bf16.msra.mxu0 0
  %744 = vmatprep.subr.bf16.mxu0 0
  %745 = vmatpush1.bf16.msra.mxu0 0
  %746 = vmatprep.mubr.bf16.mxu0 0
  %747 = vmatmul.mubr.bf16.gmra.mrb[0].mxu0 %v627
  %v748 = vpop.f32.mrb[0].mxu0
  %v749 = vadd.f32 %v664, %v748
  %v750 = vpop.f32.mrb[0].mxu0
  %v751 = vpop.f32.mrb[0].mxu0
  %v752 = vadd.f32 %v664, %v751
  %v753 = vpop.f32.mrb[0].mxu0
  %754 = vmatprep.mubr.bf16.mxu0 0
  %755 = vmatmul.mubr.bf16.gmra.mrb[0].mxu0 %v628
  %v756 = vpop.f32.mrb[0].mxu0
  %v757 = vadd.f32 %v664, %v756
  %v758 = vpop.f32.mrb[0].mxu0
  %v759 = vpop.f32.mrb[0].mxu0
  %v760 = vadd.f32 %v664, %v759
  %v761 = vpop.f32.mrb[0].mxu0
  %762 = vmatprep.mubr.bf16.mxu0 0
  %763 = vmatmul.mubr.bf16.gmra.mrb[0].mxu0 %v629
  %v764 = vpop.f32.mrb[0].mxu0
  %v765 = vadd.f32 %v664, %v764
  %v766 = vpop.f32.mrb[0].mxu0
  %v767 = vpop.f32.mrb[0].mxu0
  %v768 = vadd.f32 %v664, %v767
  %v769 = vpop.f32.mrb[0].mxu0
  %770 = vmatprep.mubr.bf16.mxu0 0
  %771 = vmatmul.mubr.bf16.gmra.mrb[0].mxu0 %v630
  %v772 = vpop.f32.mrb[0].mxu0
  %v773 = vadd.f32 %v664, %v772
  %v774 = vpop.f32.mrb[0].mxu0
  %v775 = vpop.f32.mrb[0].mxu0
  %v776 = vadd.f32 %v664, %v775
  %v777 = vpop.f32.mrb[0].mxu0
  %778 = vmatprep.mubr.bf16.mxu0 0
  %779 = vmatmul.mubr.bf16.gmra.mrb[0].mxu0 %v631
  %v780 = vpop.f32.mrb[0].mxu0
  %v781 = vadd.f32 %v664, %v780
  %v782 = vpop.f32.mrb[0].mxu0
  %v783 = vpop.f32.mrb[0].mxu0
  %v784 = vadd.f32 %v664, %v783
  %v785 = vpop.f32.mrb[0].mxu0
  %786 = vmatprep.mubr.bf16.mxu0 0
  %787 = vmatmul.mubr.bf16.gmra.mrb[0].mxu0 %v632
  %v788 = vpop.f32.mrb[0].mxu0
  %v789 = vadd.f32 %v664, %v788
  %v790 = vpop.f32.mrb[0].mxu0
  %v791 = vpop.f32.mrb[0].mxu0
  %v792 = vadd.f32 %v664, %v791
  %v793 = vpop.f32.mrb[0].mxu0
  %794 = vmatprep.mubr.bf16.mxu0 0
  %795 = vmatmul.mubr.bf16.gmra.mrb[0].mxu0 %v633
  %v796 = vpop.f32.mrb[0].mxu0
  %v797 = vadd.f32 %v664, %v796
  %v798 = vpop.f32.mrb[0].mxu0
  %v799 = vpop.f32.mrb[0].mxu0
  %v800 = vadd.f32 %v664, %v799
  %v801 = vpop.f32.mrb[0].mxu0
  %802 = vmatprep.mubr.bf16.mxu0 0
  %803 = vmatmul.mubr.bf16.gmra.mrb[0].mxu0 %v634
  %v804 = vpop.f32.mrb[0].mxu0
  %v805 = vadd.f32 %v664, %v804
  %v806 = vpop.f32.mrb[0].mxu0
  %v807 = vpop.f32.mrb[0].mxu0
  %v808 = vadd.f32 %v664, %v807
  %v809 = vpop.f32.mrb[0].mxu0
  %810 = vmatprep.mubr.bf16.mxu0 0
  %811 = vmatmul.mubr.bf16.gmra.mrb[0].mxu0 %v635
  %v812 = vpop.f32.mrb[0].mxu0
  %v813 = vadd.f32 %v664, %v812
  %v814 = vpop.f32.mrb[0].mxu0
  %v815 = vpop.f32.mrb[0].mxu0
  %v816 = vadd.f32 %v664, %v815
  %v817 = vpop.f32.mrb[0].mxu0
  %818 = vmatprep.mubr.bf16.mxu0 0
  %819 = vmatmul.mubr.bf16.gmra.mrb[0].mxu0 %v636
  %v820 = vpop.f32.mrb[0].mxu0
  %v821 = vadd.f32 %v664, %v820
  %v822 = vpop.f32.mrb[0].mxu0
  %v823 = vpop.f32.mrb[0].mxu0
  %v824 = vadd.f32 %v664, %v823
  %v825 = vpop.f32.mrb[0].mxu0
  %826 = vmatprep.mubr.bf16.mxu0 0
  %827 = vmatmul.mubr.bf16.gmra.mrb[0].mxu0 %v637
  %v828 = vpop.f32.mrb[0].mxu0
  %v829 = vadd.f32 %v664, %v828
  %v830 = vpop.f32.mrb[0].mxu0
  %v831 = vpop.f32.mrb[0].mxu0
  %v832 = vadd.f32 %v664, %v831
  %v833 = vpop.f32.mrb[0].mxu0
  %834 = vmatprep.mubr.bf16.mxu0 0
  %835 = vmatmul.mubr.bf16.gmra.mrb[0].mxu0 %v638
  %v836 = vpop.f32.mrb[0].mxu0
  %v837 = vadd.f32 %v664, %v836
  %v838 = vpop.f32.mrb[0].mxu0
  %v839 = vpop.f32.mrb[0].mxu0
  %v840 = vadd.f32 %v664, %v839
  %v841 = vpop.f32.mrb[0].mxu0
  %842 = vmatprep.mubr.bf16.mxu0 0
  %843 = vmatmul.mubr.bf16.gmra.mrb[0].mxu0 %v639
  %v844 = vpop.f32.mrb[0].mxu0
  %v845 = vadd.f32 %v664, %v844
  %v846 = vpop.f32.mrb[0].mxu0
  %v847 = vpop.f32.mrb[0].mxu0
  %v848 = vadd.f32 %v664, %v847
  %v849 = vpop.f32.mrb[0].mxu0
  %850 = vmatprep.mubr.bf16.mxu0 0
  %851 = vmatmul.mubr.bf16.gmra.mrb[0].mxu0 %v640
  %v852 = vpop.f32.mrb[0].mxu0
  %v853 = vadd.f32 %v664, %v852
  %v854 = vpop.f32.mrb[0].mxu0
  %v855 = vpop.f32.mrb[0].mxu0
  %v856 = vadd.f32 %v664, %v855
  %v857 = vpop.f32.mrb[0].mxu0
  %858 = vmatprep.mubr.bf16.mxu0 0
  %859 = vmatmul.mubr.bf16.gmra.mrb[0].mxu0 %v641
  %v860 = vpop.f32.mrb[0].mxu0
  %v861 = vadd.f32 %v664, %v860
  %v862 = vpop.f32.mrb[0].mxu0
  %v863 = vpop.f32.mrb[0].mxu0
  %v864 = vadd.f32 %v664, %v863
  %v865 = vpop.f32.mrb[0].mxu0
  %866 = vmatprep.mubr.bf16.mxu0 0
  %867 = vmatmul.mubr.bf16.gmra.mrb[0].mxu0 %v642
  %v868 = vpop.f32.mrb[0].mxu0
  %v869 = vadd.f32 %v664, %v868
  %v870 = vpop.f32.mrb[0].mxu0
  %v871 = vpop.f32.mrb[0].mxu0
  %v872 = vadd.f32 %v664, %v871
  %v873 = vpop.f32.mrb[0].mxu0
  %874 = vdwg.mxu0
  %vm875 = vcmask 130048
  %876 = vst.msk [vmem:[%s3] sm:$0xff] %vm875, %v749
  %877 = vst.msk [vmem:[%s3 + $0x8] sm:$0xff] %vm875, %v752
  %878 = vst.msk [vmem:[%s3 + $0x10] sm:$0xff] %vm875, %v757
  %879 = vst.msk [vmem:[%s3 + $0x18] sm:$0xff] %vm875, %v760
  %880 = vst.msk [vmem:[%s3 + $0x20] sm:$0xff] %vm875, %v765
  %881 = vst.msk [vmem:[%s3 + $0x28] sm:$0xff] %vm875, %v768
  %882 = vst.msk [vmem:[%s3 + $0x30] sm:$0xff] %vm875, %v773
  %883 = vst.msk [vmem:[%s3 + $0x38] sm:$0xff] %vm875, %v776
  %884 = vst.msk [vmem:[%s3 + $0x40] sm:$0xff] %vm875, %v781
  %885 = vst.msk [vmem:[%s3 + $0x48] sm:$0xff] %vm875, %v784
  %886 = vst.msk [vmem:[%s3 + $0x50] sm:$0xff] %vm875, %v789
  %887 = vst.msk [vmem:[%s3 + $0x58] sm:$0xff] %vm875, %v792
  %888 = vst.msk [vmem:[%s3 + $0x60] sm:$0xff] %vm875, %v797
  %889 = vst.msk [vmem:[%s3 + $0x68] sm:$0xff] %vm875, %v800
  %890 = vst.msk [vmem:[%s3 + $0x70] sm:$0xff] %vm875, %v805
  %891 = vst.msk [vmem:[%s3 + $0x78] sm:$0xff] %vm875, %v808
  %892 = vst.msk [vmem:[%s3 + $0x80] sm:$0xff] %vm875, %v813
  %893 = vst.msk [vmem:[%s3 + $0x88] sm:$0xff] %vm875, %v816
  %894 = vst.msk [vmem:[%s3 + $0x90] sm:$0xff] %vm875, %v821
  %895 = vst.msk [vmem:[%s3 + $0x98] sm:$0xff] %vm875, %v824
  %896 = vst.msk [vmem:[%s3 + $0xa0] sm:$0xff] %vm875, %v829
  %897 = vst.msk [vmem:[%s3 + $0xa8] sm:$0xff] %vm875, %v832
  %898 = vst.msk [vmem:[%s3 + $0xb0] sm:$0xff] %vm875, %v837
  %899 = vst.msk [vmem:[%s3 + $0xb8] sm:$0xff] %vm875, %v840
  %900 = vst.msk [vmem:[%s3 + $0xc0] sm:$0xff] %vm875, %v845
  %901 = vst.msk [vmem:[%s3 + $0xc8] sm:$0xff] %vm875, %v848
  %902 = vst.msk [vmem:[%s3 + $0xd0] sm:$0xff] %vm875, %v853
  %903 = vst.msk [vmem:[%s3 + $0xd8] sm:$0xff] %vm875, %v856
  %904 = vst.msk [vmem:[%s3 + $0xe0] sm:$0xff] %vm875, %v861
  %905 = vst.msk [vmem:[%s3 + $0xe8] sm:$0xff] %vm875, %v864
  %906 = vst.msk [vmem:[%s3 + $0xf0] sm:$0xff] %vm875, %v869
  %907 = vst.msk [vmem:[%s3 + $0xf8] sm:$0xff] %vm875, %v872
  // Predicated region
  $region14: #{tpu_custom_call.1} parent=0 // pred_check
    _
  $region15: #{tpu_custom_call.1} parent=0 // pred_check_branch
    %909 = sbr.rel (0) target = $region17
  $region16: #{tpu_custom_call.1} parent=0 // pred_region
    _
  $region17: #{tpu_custom_call.1} parent=0 // pred_fallthru
    _
  // Predicated region
  $region18: #{tpu_custom_call.1} parent=0 // pred_check
    _
  $region19: #{tpu_custom_call.1} parent=0 // pred_check_branch
    %911 = sbr.rel (0) target = $region21
  $region20: #{tpu_custom_call.1} parent=0 // pred_region
    _
  $region21: #{tpu_custom_call.1} parent=0 // pred_fallthru
    _

// kernel: tpu_custom_call.1
$region0: #{tpu_custom_call.1}
  #allocation0 [shape = 'u32[]', space=smem, size = 0x4, offset = 0x4, fixed_abs, tag = 'smem constant byte address 0x4 - core index']
  #allocation1 [shape = 'u32[144,128]{1,0:T(1,128)}', space=vmem, size = 0x12000, scoped, tag = 'internal scratch']
  #allocation2 [shape = 'bf16[256,128]{1,0:T(16,128)(2,1)}', space=vmem, size = 0x10000, scoped, tag = 'scratch operand']
  %s0 = inlined_call_operand.vmem [shape: f32[256,32], index: 0, kind: input, shape index: {}]
  %s1 = inlined_call_operand.vmem [shape: bf16[128,16], index: 1, kind: input, shape index: {}]
  %s2 = inlined_call_operand.vmem [shape: f32[1,16], index: 2, kind: input, shape index: {}]
  %s3 = inlined_call_operand.vmem [shape: f32[256,16], index: 3, kind: output, shape index: {}]
  %s4 = sld [smem:[#allocation0]]
  $region22: #{tpu_custom_call.1} parent=0
    _
  %s6 = ssub.s32 1, %s4
  %s7 = scalar_select 0, %s6, %s4
  // Predicated region
  $region2: #{tpu_custom_call.1} parent=0 // pred_check
    _
  $region3: #{tpu_custom_call.1} parent=0 // pred_check_branch
    %9 = sbr.rel (0) target = $region5
  $region4: #{tpu_custom_call.1} parent=0 // pred_region
    _
  $region5: #{tpu_custom_call.1} parent=0 // pred_fallthru
    _
  // Predicated region
  $region6: #{tpu_custom_call.1} parent=0 // pred_check
    _
  $region7: #{tpu_custom_call.1} parent=0 // pred_check_branch
    %11 = sbr.rel (0) target = $region9
  $region8: #{tpu_custom_call.1} parent=0 // pred_region
    _
  $region9: #{tpu_custom_call.1} parent=0 // pred_fallthru
    _
  // Predicated region
  $region10: #{tpu_custom_call.1} parent=0 // pred_check
    _
  $region11: #{tpu_custom_call.1} parent=0 // pred_check_branch
    %13 = sbr.rel (0) target = $region13
  $region12: #{tpu_custom_call.1} parent=0 // pred_region
    _
  $region13: #{tpu_custom_call.1} parent=0 // pred_fallthru
    _
  %v15 = vld [vmem:[%s0] sm:$0xff]
  %v16 = vld [vmem:[%s0 + $0x8] sm:$0xff]
  %v17 = vld [vmem:[%s0 + $0x10] sm:$0xff]
  %v18 = vld [vmem:[%s0 + $0x18] sm:$0xff]
  %v19 = vld [vmem:[%s0 + $0x20] sm:$0xff]
  %v20 = vld [vmem:[%s0 + $0x28] sm:$0xff]
  %v21 = vld [vmem:[%s0 + $0x30] sm:$0xff]
  %v22 = vld [vmem:[%s0 + $0x38] sm:$0xff]
  %v23 = vld [vmem:[%s0 + $0x40] sm:$0xff]
  %v24 = vld [vmem:[%s0 + $0x48] sm:$0xff]
  %v25 = vld [vmem:[%s0 + $0x50] sm:$0xff]
  %v26 = vld [vmem:[%s0 + $0x58] sm:$0xff]
  %v27 = vld [vmem:[%s0 + $0x60] sm:$0xff]
  %v28 = vld [vmem:[%s0 + $0x68] sm:$0xff]
  %v29 = vld [vmem:[%s0 + $0x70] sm:$0xff]
  %v30 = vld [vmem:[%s0 + $0x78] sm:$0xff]
  %v31 = vld [vmem:[%s0 + $0x80] sm:$0xff]
  %v32 = vld [vmem:[%s0 + $0x88] sm:$0xff]
  %v33 = vld [vmem:[%s0 + $0x90] sm:$0xff]
  %v34 = vld [vmem:[%s0 + $0x98] sm:$0xff]
  %v35 = vld [vmem:[%s0 + $0xa0] sm:$0xff]
  %v36 = vld [vmem:[%s0 + $0xa8] sm:$0xff]
  %v37 = vld [vmem:[%s0 + $0xb0] sm:$0xff]
  %v38 = vld [vmem:[%s0 + $0xb8] sm:$0xff]
  %v39 = vld [vmem:[%s0 + $0xc0] sm:$0xff]
  %v40 = vld [vmem:[%s0 + $0xc8] sm:$0xff]
  %v41 = vld [vmem:[%s0 + $0xd0] sm:$0xff]
  %v42 = vld [vmem:[%s0 + $0xd8] sm:$0xff]
  %v43 = vld [vmem:[%s0 + $0xe0] sm:$0xff]
  %v44 = vld [vmem:[%s0 + $0xe8] sm:$0xff]
  %v45 = vld [vmem:[%s0 + $0xf0] sm:$0xff]
  %v46 = vld [vmem:[%s0 + $0xf8] sm:$0xff]
  %v47 = vtanh.pop %v15
  %v48 = vtanh.pop %v16
  %v49 = vtanh.pop %v17
  %v50 = vtanh.pop %v18
  %v51 = vtanh.pop %v19
  %v52 = vtanh.pop %v20
  %v53 = vtanh.pop %v21
  %v54 = vtanh.pop %v22
  %v55 = vtanh.pop %v23
  %v56 = vtanh.pop %v24
  %v57 = vtanh.pop %v25
  %v58 = vtanh.pop %v26
  %v59 = vtanh.pop %v27
  %v60 = vtanh.pop %v28
  %v61 = vtanh.pop %v29
  %v62 = vtanh.pop %v30
  %v63 = vtanh.pop %v31
  %v64 = vtanh.pop %v32
  %v65 = vtanh.pop %v33
  %v66 = vtanh.pop %v34
  %v67 = vtanh.pop %v35
  %v68 = vtanh.pop %v36
  %v69 = vtanh.pop %v37
  %v70 = vtanh.pop %v38
  %v71 = vtanh.pop %v39
  %v72 = vtanh.pop %v40
  %v73 = vtanh.pop %v41
  %v74 = vtanh.pop %v42
  %v75 = vtanh.pop %v43
  %v76 = vtanh.pop %v44
  %v77 = vtanh.pop %v45
  %v78 = vtanh.pop %v46
  %v79 = vmul.f32 %v47, 2.0
  %v80 = vmul.f32 %v48, 2.0
  %v81 = vmul.f32 %v49, 2.0
  %v82 = vmul.f32 %v50, 2.0
  %v83 = vmul.f32 %v51, 2.0
  %v84 = vmul.f32 %v52, 2.0
  %v85 = vmul.f32 %v53, 2.0
  %v86 = vmul.f32 %v54, 2.0
  %v87 = vmul.f32 %v55, 2.0
  %v88 = vmul.f32 %v56, 2.0
  %v89 = vmul.f32 %v57, 2.0
  %v90 = vmul.f32 %v58, 2.0
  %v91 = vmul.f32 %v59, 2.0
  %v92 = vmul.f32 %v60, 2.0
  %v93 = vmul.f32 %v61, 2.0
  %v94 = vmul.f32 %v62, 2.0
  %v95 = vmul.f32 %v63, 2.0
  %v96 = vmul.f32 %v64, 2.0
  %v97 = vmul.f32 %v65, 2.0
  %v98 = vmul.f32 %v66, 2.0
  %v99 = vmul.f32 %v67, 2.0
  %v100 = vmul.f32 %v68, 2.0
  %v101 = vmul.f32 %v69, 2.0
  %v102 = vmul.f32 %v70, 2.0
  %v103 = vmul.f32 %v71, 2.0
  %v104 = vmul.f32 %v72, 2.0
  %v105 = vmul.f32 %v73, 2.0
  %v106 = vmul.f32 %v74, 2.0
  %v107 = vmul.f32 %v75, 2.0
  %v108 = vmul.f32 %v76, 2.0
  %v109 = vmul.f32 %v77, 2.0
  %v110 = vmul.f32 %v78, 2.0
  %v111 = vpack.c.bf16 %v48, %v47
  %v112 = vpack.c.bf16 %v50, %v49
  %v113 = vpack.c.bf16 %v52, %v51
  %v114 = vpack.c.bf16 %v54, %v53
  %v115 = vpack.c.bf16 %v56, %v55
  %v116 = vpack.c.bf16 %v58, %v57
  %v117 = vpack.c.bf16 %v60, %v59
  %v118 = vpack.c.bf16 %v62, %v61
  %v119 = vpack.c.bf16 %v64, %v63
  %v120 = vpack.c.bf16 %v66, %v65
  %v121 = vpack.c.bf16 %v68, %v67
  %v122 = vpack.c.bf16 %v70, %v69
  %v123 = vpack.c.bf16 %v72, %v71
  %v124 = vpack.c.bf16 %v74, %v73
  %v125 = vpack.c.bf16 %v76, %v75
  %v126 = vpack.c.bf16 %v78, %v77
  %vm127 = vcmask 261120
  %128 = vst.msk [vmem:[#allocation2] sm:$0xff] %vm127, %v111
  %129 = vst.msk [vmem:[#allocation2 + $0x8] sm:$0xff] %vm127, %v112
  %130 = vst.msk [vmem:[#allocation2 + $0x10] sm:$0xff] %vm127, %v113
  %131 = vst.msk [vmem:[#allocation2 + $0x18] sm:$0xff] %vm127, %v114
  %132 = vst.msk [vmem:[#allocation2 + $0x20] sm:$0xff] %vm127, %v115
  %133 = vst.msk [vmem:[#allocation2 + $0x28] sm:$0xff] %vm127, %v116
  %134 = vst.msk [vmem:[#allocation2 + $0x30] sm:$0xff] %vm127, %v117
  %135 = vst.msk [vmem:[#allocation2 + $0x38] sm:$0xff] %vm127, %v118
  %136 = vst.msk [vmem:[#allocation2 + $0x40] sm:$0xff] %vm127, %v119
  %137 = vst.msk [vmem:[#allocation2 + $0x48] sm:$0xff] %vm127, %v120
  %138 = vst.msk [vmem:[#allocation2 + $0x50] sm:$0xff] %vm127, %v121
  %139 = vst.msk [vmem:[#allocation2 + $0x58] sm:$0xff] %vm127, %v122
  %140 = vst.msk [vmem:[#allocation2 + $0x60] sm:$0xff] %vm127, %v123
  %141 = vst.msk [vmem:[#allocation2 + $0x68] sm:$0xff] %vm127, %v124
  %142 = vst.msk [vmem:[#allocation2 + $0x70] sm:$0xff] %vm127, %v125
  %143 = vst.msk [vmem:[#allocation2 + $0x78] sm:$0xff] %vm127, %v126
  %v144 = vmul.f32 %v79, %v47
  %v145 = vmul.f32 %v80, %v48
  %v146 = vmul.f32 %v81, %v49
  %v147 = vmul.f32 %v82, %v50
  %v148 = vmul.f32 %v83, %v51
  %v149 = vmul.f32 %v84, %v52
  %v150 = vmul.f32 %v85, %v53
  %v151 = vmul.f32 %v86, %v54
  %v152 = vmul.f32 %v87, %v55
  %v153 = vmul.f32 %v88, %v56
  %v154 = vmul.f32 %v89, %v57
  %v155 = vmul.f32 %v90, %v58
  %v156 = vmul.f32 %v91, %v59
  %v157 = vmul.f32 %v92, %v60
  %v158 = vmul.f32 %v93, %v61
  %v159 = vmul.f32 %v94, %v62
  %v160 = vmul.f32 %v95, %v63
  %v161 = vmul.f32 %v96, %v64
  %v162 = vmul.f32 %v97, %v65
  %v163 = vmul.f32 %v98, %v66
  %v164 = vmul.f32 %v99, %v67
  %v165 = vmul.f32 %v100, %v68
  %v166 = vmul.f32 %v101, %v69
  %v167 = vmul.f32 %v102, %v70
  %v168 = vmul.f32 %v103, %v71
  %v169 = vmul.f32 %v104, %v72
  %v170 = vmul.f32 %v105, %v73
  %v171 = vmul.f32 %v106, %v74
  %v172 = vmul.f32 %v107, %v75
  %v173 = vmul.f32 %v108, %v76
  %v174 = vmul.f32 %v109, %v77
  %v175 = vmul.f32 %v110, %v78
  %v176 = vsub.f32 %v144, 1.0
  %v177 = vsub.f32 %v145, 1.0
  %v178 = vsub.f32 %v146, 1.0
  %v179 = vsub.f32 %v147, 1.0
  %v180 = vsub.f32 %v148, 1.0
  %v181 = vsub.f32 %v149, 1.0
  %v182 = vsub.f32 %v150, 1.0
  %v183 = vsub.f32 %v151, 1.0
  %v184 = vsub.f32 %v152, 1.0
  %v185 = vsub.f32 %v153, 1.0
  %v186 = vsub.f32 %v154, 1.0
  %v187 = vsub.f32 %v155, 1.0
  %v188 = vsub.f32 %v156, 1.0
  %v189 = vsub.f32 %v157, 1.0
  %v190 = vsub.f32 %v158, 1.0
  %v191 = vsub.f32 %v159, 1.0
  %v192 = vsub.f32 %v160, 1.0
  %v193 = vsub.f32 %v161, 1.0
  %v194 = vsub.f32 %v162, 1.0
  %v195 = vsub.f32 %v163, 1.0
  %v196 = vsub.f32 %v164, 1.0
  %v197 = vsub.f32 %v165, 1.0
  %v198 = vsub.f32 %v166, 1.0
  %v199 = vsub.f32 %v167, 1.0
  %v200 = vsub.f32 %v168, 1.0
  %v201 = vsub.f32 %v169, 1.0
  %v202 = vsub.f32 %v170, 1.0
  %v203 = vsub.f32 %v171, 1.0
  %v204 = vsub.f32 %v172, 1.0
  %v205 = vsub.f32 %v173, 1.0
  %v206 = vsub.f32 %v174, 1.0
  %v207 = vsub.f32 %v175, 1.0
  %v208 = vpack.c.bf16 %v177, %v176
  %v209 = vpack.c.bf16 %v179, %v178
  %v210 = vpack.c.bf16 %v181, %v180
  %v211 = vpack.c.bf16 %v183, %v182
  %v212 = vpack.c.bf16 %v185, %v184
  %v213 = vpack.c.bf16 %v187, %v186
  %v214 = vpack.c.bf16 %v189, %v188
  %v215 = vpack.c.bf16 %v191, %v190
  %v216 = vpack.c.bf16 %v193, %v192
  %v217 = vpack.c.bf16 %v195, %v194
  %v218 = vpack.c.bf16 %v197, %v196
  %v219 = vpack.c.bf16 %v199, %v198
  %v220 = vpack.c.bf16 %v201, %v200
  %v221 = vpack.c.bf16 %v203, %v202
  %v222 = vpack.c.bf16 %v205, %v204
  %v223 = vpack.c.bf16 %v207, %v206
  %240 = vrot.lane.b32.xlu0 %v208, 32
  %v241 = vpop.permute.xlu0 %240
  %242 = vrot.lane.b32.xlu0 %v209, 32
  %v243 = vpop.permute.xlu0 %242
  %244 = vrot.lane.b32.xlu0 %v210, 32
  %v245 = vpop.permute.xlu0 %244
  %246 = vrot.lane.b32.xlu0 %v211, 32
  %v247 = vpop.permute.xlu0 %246
  %248 = vrot.lane.b32.xlu0 %v212, 32
  %v249 = vpop.permute.xlu0 %248
  %250 = vrot.lane.b32.xlu0 %v213, 32
  %v251 = vpop.permute.xlu0 %250
  %252 = vrot.lane.b32.xlu0 %v214, 32
  %v253 = vpop.permute.xlu0 %252
  %254 = vrot.lane.b32.xlu0 %v215, 32
  %v255 = vpop.permute.xlu0 %254
  %256 = vrot.lane.b32.xlu0 %v216, 32
  %v257 = vpop.permute.xlu0 %256
  %258 = vrot.lane.b32.xlu0 %v217, 32
  %v259 = vpop.permute.xlu0 %258
  %260 = vrot.lane.b32.xlu0 %v218, 32
  %v261 = vpop.permute.xlu0 %260
  %262 = vrot.lane.b32.xlu0 %v219, 32
  %v263 = vpop.permute.xlu0 %262
  %264 = vrot.lane.b32.xlu0 %v220, 32
  %v265 = vpop.permute.xlu0 %264
  %266 = vrot.lane.b32.xlu0 %v221, 32
  %v267 = vpop.permute.xlu0 %266
  %268 = vrot.lane.b32.xlu0 %v222, 32
  %v269 = vpop.permute.xlu0 %268
  %270 = vrot.lane.b32.xlu0 %v223, 32
  %v271 = vpop.permute.xlu0 %270
  %vm288 = vcmask 523520
  %289 = vst.msk [vmem:[#allocation2] sm:$0xff] %vm288, %v241
  %290 = vst.msk [vmem:[#allocation2 + $0x8] sm:$0xff] %vm288, %v243
  %291 = vst.msk [vmem:[#allocation2 + $0x10] sm:$0xff] %vm288, %v245
  %292 = vst.msk [vmem:[#allocation2 + $0x18] sm:$0xff] %vm288, %v247
  %293 = vst.msk [vmem:[#allocation2 + $0x20] sm:$0xff] %vm288, %v249
  %294 = vst.msk [vmem:[#allocation2 + $0x28] sm:$0xff] %vm288, %v251
  %295 = vst.msk [vmem:[#allocation2 + $0x30] sm:$0xff] %vm288, %v253
  %296 = vst.msk [vmem:[#allocation2 + $0x38] sm:$0xff] %vm288, %v255
  %297 = vst.msk [vmem:[#allocation2 + $0x40] sm:$0xff] %vm288, %v257
  %298 = vst.msk [vmem:[#allocation2 + $0x48] sm:$0xff] %vm288, %v259
  %299 = vst.msk [vmem:[#allocation2 + $0x50] sm:$0xff] %vm288, %v261
  %300 = vst.msk [vmem:[#allocation2 + $0x58] sm:$0xff] %vm288, %v263
  %301 = vst.msk [vmem:[#allocation2 + $0x60] sm:$0xff] %vm288, %v265
  %302 = vst.msk [vmem:[#allocation2 + $0x68] sm:$0xff] %vm288, %v267
  %303 = vst.msk [vmem:[#allocation2 + $0x70] sm:$0xff] %vm288, %v269
  %304 = vst.msk [vmem:[#allocation2 + $0x78] sm:$0xff] %vm288, %v271
  %v305 = vmul.f32 %v79, %v176
  %v306 = vmul.f32 %v80, %v177
  %v307 = vmul.f32 %v81, %v178
  %v308 = vmul.f32 %v82, %v179
  %v309 = vmul.f32 %v83, %v180
  %v310 = vmul.f32 %v84, %v181
  %v311 = vmul.f32 %v85, %v182
  %v312 = vmul.f32 %v86, %v183
  %v313 = vmul.f32 %v87, %v184
  %v314 = vmul.f32 %v88, %v185
  %v315 = vmul.f32 %v89, %v186
  %v316 = vmul.f32 %v90, %v187
  %v317 = vmul.f32 %v91, %v188
  %v318 = vmul.f32 %v92, %v189
  %v319 = vmul.f32 %v93, %v190
  %v320 = vmul.f32 %v94, %v191
  %v321 = vmul.f32 %v95, %v192
  %v322 = vmul.f32 %v96, %v193
  %v323 = vmul.f32 %v97, %v194
  %v324 = vmul.f32 %v98, %v195
  %v325 = vmul.f32 %v99, %v196
  %v326 = vmul.f32 %v100, %v197
  %v327 = vmul.f32 %v101, %v198
  %v328 = vmul.f32 %v102, %v199
  %v329 = vmul.f32 %v103, %v200
  %v330 = vmul.f32 %v104, %v201
  %v331 = vmul.f32 %v105, %v202
  %v332 = vmul.f32 %v106, %v203
  %v333 = vmul.f32 %v107, %v204
  %v334 = vmul.f32 %v108, %v205
  %v335 = vmul.f32 %v109, %v206
  %v336 = vmul.f32 %v110, %v207
  %v337 = vsub.f32 %v305, %v47
  %v338 = vsub.f32 %v306, %v48
  %v339 = vsub.f32 %v307, %v49
  %v340 = vsub.f32 %v308, %v50
  %v341 = vsub.f32 %v309, %v51
  %v342 = vsub.f32 %v310, %v52
  %v343 = vsub.f32 %v311, %v53
  %v344 = vsub.f32 %v312, %v54
  %v345 = vsub.f32 %v313, %v55
  %v346 = vsub.f32 %v314, %v56
  %v347 = vsub.f32 %v315, %v57
  %v348 = vsub.f32 %v316, %v58
  %v349 = vsub.f32 %v317, %v59
  %v350 = vsub.f32 %v318, %v60
  %v351 = vsub.f32 %v319, %v61
  %v352 = vsub.f32 %v320, %v62
  %v353 = vsub.f32 %v321, %v63
  %v354 = vsub.f32 %v322, %v64
  %v355 = vsub.f32 %v323, %v65
  %v356 = vsub.f32 %v324, %v66
  %v357 = vsub.f32 %v325, %v67
  %v358 = vsub.f32 %v326, %v68
  %v359 = vsub.f32 %v327, %v69
  %v360 = vsub.f32 %v328, %v70
  %v361 = vsub.f32 %v329, %v71
  %v362 = vsub.f32 %v330, %v72
  %v363 = vsub.f32 %v331, %v73
  %v364 = vsub.f32 %v332, %v74
  %v365 = vsub.f32 %v333, %v75
  %v366 = vsub.f32 %v334, %v76
  %v367 = vsub.f32 %v335, %v77
  %v368 = vsub.f32 %v336, %v78
  %v369 = vpack.c.bf16 %v338, %v337
  %v370 = vpack.c.bf16 %v340, %v339
  %v371 = vpack.c.bf16 %v342, %v341
  %v372 = vpack.c.bf16 %v344, %v343
  %v373 = vpack.c.bf16 %v346, %v345
  %v374 = vpack.c.bf16 %v348, %v347
  %v375 = vpack.c.bf16 %v350, %v349
  %v376 = vpack.c.bf16 %v352, %v351
  %v377 = vpack.c.bf16 %v354, %v353
  %v378 = vpack.c.bf16 %v356, %v355
  %v379 = vpack.c.bf16 %v358, %v357
  %v380 = vpack.c.bf16 %v360, %v359
  %v381 = vpack.c.bf16 %v362, %v361
  %v382 = vpack.c.bf16 %v364, %v363
  %v383 = vpack.c.bf16 %v366, %v365
  %v384 = vpack.c.bf16 %v368, %v367
  %401 = vrot.lane.b32.xlu0 %v369, 64
  %v402 = vpop.permute.xlu0 %401
  %403 = vrot.lane.b32.xlu0 %v370, 64
  %v404 = vpop.permute.xlu0 %403
  %405 = vrot.lane.b32.xlu0 %v371, 64
  %v406 = vpop.permute.xlu0 %405
  %407 = vrot.lane.b32.xlu0 %v372, 64
  %v408 = vpop.permute.xlu0 %407
  %409 = vrot.lane.b32.xlu0 %v373, 64
  %v410 = vpop.permute.xlu0 %409
  %411 = vrot.lane.b32.xlu0 %v374, 64
  %v412 = vpop.permute.xlu0 %411
  %413 = vrot.lane.b32.xlu0 %v375, 64
  %v414 = vpop.permute.xlu0 %413
  %415 = vrot.lane.b32.xlu0 %v376, 64
  %v416 = vpop.permute.xlu0 %415
  %417 = vrot.lane.b32.xlu0 %v377, 64
  %v418 = vpop.permute.xlu0 %417
  %419 = vrot.lane.b32.xlu0 %v378, 64
  %v420 = vpop.permute.xlu0 %419
  %421 = vrot.lane.b32.xlu0 %v379, 64
  %v422 = vpop.permute.xlu0 %421
  %423 = vrot.lane.b32.xlu0 %v380, 64
  %v424 = vpop.permute.xlu0 %423
  %425 = vrot.lane.b32.xlu0 %v381, 64
  %v426 = vpop.permute.xlu0 %425
  %427 = vrot.lane.b32.xlu0 %v382, 64
  %v428 = vpop.permute.xlu0 %427
  %429 = vrot.lane.b32.xlu0 %v383, 64
  %v430 = vpop.permute.xlu0 %429
  %431 = vrot.lane.b32.xlu0 %v384, 64
  %v432 = vpop.permute.xlu0 %431
  %vm449 = vcmask 785920
  %450 = vst.msk [vmem:[#allocation2] sm:$0xff] %vm449, %v402
  %451 = vst.msk [vmem:[#allocation2 + $0x8] sm:$0xff] %vm449, %v404
  %452 = vst.msk [vmem:[#allocation2 + $0x10] sm:$0xff] %vm449, %v406
  %453 = vst.msk [vmem:[#allocation2 + $0x18] sm:$0xff] %vm449, %v408
  %454 = vst.msk [vmem:[#allocation2 + $0x20] sm:$0xff] %vm449, %v410
  %455 = vst.msk [vmem:[#allocation2 + $0x28] sm:$0xff] %vm449, %v412
  %456 = vst.msk [vmem:[#allocation2 + $0x30] sm:$0xff] %vm449, %v414
  %457 = vst.msk [vmem:[#allocation2 + $0x38] sm:$0xff] %vm449, %v416
  %458 = vst.msk [vmem:[#allocation2 + $0x40] sm:$0xff] %vm449, %v418
  %459 = vst.msk [vmem:[#allocation2 + $0x48] sm:$0xff] %vm449, %v420
  %460 = vst.msk [vmem:[#allocation2 + $0x50] sm:$0xff] %vm449, %v422
  %461 = vst.msk [vmem:[#allocation2 + $0x58] sm:$0xff] %vm449, %v424
  %462 = vst.msk [vmem:[#allocation2 + $0x60] sm:$0xff] %vm449, %v426
  %463 = vst.msk [vmem:[#allocation2 + $0x68] sm:$0xff] %vm449, %v428
  %464 = vst.msk [vmem:[#allocation2 + $0x70] sm:$0xff] %vm449, %v430
  %465 = vst.msk [vmem:[#allocation2 + $0x78] sm:$0xff] %vm449, %v432
  %v466 = vmul.f32 %v79, %v337
  %v467 = vmul.f32 %v80, %v338
  %v468 = vmul.f32 %v81, %v339
  %v469 = vmul.f32 %v82, %v340
  %v470 = vmul.f32 %v83, %v341
  %v471 = vmul.f32 %v84, %v342
  %v472 = vmul.f32 %v85, %v343
  %v473 = vmul.f32 %v86, %v344
  %v474 = vmul.f32 %v87, %v345
  %v475 = vmul.f32 %v88, %v346
  %v476 = vmul.f32 %v89, %v347
  %v477 = vmul.f32 %v90, %v348
  %v478 = vmul.f32 %v91, %v349
  %v479 = vmul.f32 %v92, %v350
  %v480 = vmul.f32 %v93, %v351
  %v481 = vmul.f32 %v94, %v352
  %v482 = vmul.f32 %v95, %v353
  %v483 = vmul.f32 %v96, %v354
  %v484 = vmul.f32 %v97, %v355
  %v485 = vmul.f32 %v98, %v356
  %v486 = vmul.f32 %v99, %v357
  %v487 = vmul.f32 %v100, %v358
  %v488 = vmul.f32 %v101, %v359
  %v489 = vmul.f32 %v102, %v360
  %v490 = vmul.f32 %v103, %v361
  %v491 = vmul.f32 %v104, %v362
  %v492 = vmul.f32 %v105, %v363
  %v493 = vmul.f32 %v106, %v364
  %v494 = vmul.f32 %v107, %v365
  %v495 = vmul.f32 %v108, %v366
  %v496 = vmul.f32 %v109, %v367
  %v497 = vmul.f32 %v110, %v368
  %v498 = vsub.f32 %v466, %v176
  %v499 = vsub.f32 %v467, %v177
  %v500 = vsub.f32 %v468, %v178
  %v501 = vsub.f32 %v469, %v179
  %v502 = vsub.f32 %v470, %v180
  %v503 = vsub.f32 %v471, %v181
  %v504 = vsub.f32 %v472, %v182
  %v505 = vsub.f32 %v473, %v183
  %v506 = vsub.f32 %v474, %v184
  %v507 = vsub.f32 %v475, %v185
  %v508 = vsub.f32 %v476, %v186
  %v509 = vsub.f32 %v477, %v187
  %v510 = vsub.f32 %v478, %v188
  %v511 = vsub.f32 %v479, %v189
  %v512 = vsub.f32 %v480, %v190
  %v513 = vsub.f32 %v481, %v191
  %v514 = vsub.f32 %v482, %v192
  %v515 = vsub.f32 %v483, %v193
  %v516 = vsub.f32 %v484, %v194
  %v517 = vsub.f32 %v485, %v195
  %v518 = vsub.f32 %v486, %v196
  %v519 = vsub.f32 %v487, %v197
  %v520 = vsub.f32 %v488, %v198
  %v521 = vsub.f32 %v489, %v199
  %v522 = vsub.f32 %v490, %v200
  %v523 = vsub.f32 %v491, %v201
  %v524 = vsub.f32 %v492, %v202
  %v525 = vsub.f32 %v493, %v203
  %v526 = vsub.f32 %v494, %v204
  %v527 = vsub.f32 %v495, %v205
  %v528 = vsub.f32 %v496, %v206
  %v529 = vsub.f32 %v497, %v207
  %v530 = vpack.c.bf16 %v499, %v498
  %v531 = vpack.c.bf16 %v501, %v500
  %v532 = vpack.c.bf16 %v503, %v502
  %v533 = vpack.c.bf16 %v505, %v504
  %v534 = vpack.c.bf16 %v507, %v506
  %v535 = vpack.c.bf16 %v509, %v508
  %v536 = vpack.c.bf16 %v511, %v510
  %v537 = vpack.c.bf16 %v513, %v512
  %v538 = vpack.c.bf16 %v515, %v514
  %v539 = vpack.c.bf16 %v517, %v516
  %v540 = vpack.c.bf16 %v519, %v518
  %v541 = vpack.c.bf16 %v521, %v520
  %v542 = vpack.c.bf16 %v523, %v522
  %v543 = vpack.c.bf16 %v525, %v524
  %v544 = vpack.c.bf16 %v527, %v526
  %v545 = vpack.c.bf16 %v529, %v528
  %562 = vrot.lane.b32.xlu0 %v530, 96
  %v563 = vpop.permute.xlu0 %562
  %564 = vrot.lane.b32.xlu0 %v531, 96
  %v565 = vpop.permute.xlu0 %564
  %566 = vrot.lane.b32.xlu0 %v532, 96
  %v567 = vpop.permute.xlu0 %566
  %568 = vrot.lane.b32.xlu0 %v533, 96
  %v569 = vpop.permute.xlu0 %568
  %570 = vrot.lane.b32.xlu0 %v534, 96
  %v571 = vpop.permute.xlu0 %570
  %572 = vrot.lane.b32.xlu0 %v535, 96
  %v573 = vpop.permute.xlu0 %572
  %574 = vrot.lane.b32.xlu0 %v536, 96
  %v575 = vpop.permute.xlu0 %574
  %576 = vrot.lane.b32.xlu0 %v537, 96
  %v577 = vpop.permute.xlu0 %576
  %578 = vrot.lane.b32.xlu0 %v538, 96
  %v579 = vpop.permute.xlu0 %578
  %580 = vrot.lane.b32.xlu0 %v539, 96
  %v581 = vpop.permute.xlu0 %580
  %582 = vrot.lane.b32.xlu0 %v540, 96
  %v583 = vpop.permute.xlu0 %582
  %584 = vrot.lane.b32.xlu0 %v541, 96
  %v585 = vpop.permute.xlu0 %584
  %586 = vrot.lane.b32.xlu0 %v542, 96
  %v587 = vpop.permute.xlu0 %586
  %588 = vrot.lane.b32.xlu0 %v543, 96
  %v589 = vpop.permute.xlu0 %588
  %590 = vrot.lane.b32.xlu0 %v544, 96
  %v591 = vpop.permute.xlu0 %590
  %592 = vrot.lane.b32.xlu0 %v545, 96
  %v593 = vpop.permute.xlu0 %592
  %vm610 = vcmask 1048320
  %611 = vst.msk [vmem:[#allocation2] sm:$0xff] %vm610, %v563
  %612 = vst.msk [vmem:[#allocation2 + $0x8] sm:$0xff] %vm610, %v565
  %613 = vst.msk [vmem:[#allocation2 + $0x10] sm:$0xff] %vm610, %v567
  %614 = vst.msk [vmem:[#allocation2 + $0x18] sm:$0xff] %vm610, %v569
  %615 = vst.msk [vmem:[#allocation2 + $0x20] sm:$0xff] %vm610, %v571
  %616 = vst.msk [vmem:[#allocation2 + $0x28] sm:$0xff] %vm610, %v573
  %617 = vst.msk [vmem:[#allocation2 + $0x30] sm:$0xff] %vm610, %v575
  %618 = vst.msk [vmem:[#allocation2 + $0x38] sm:$0xff] %vm610, %v577
  %619 = vst.msk [vmem:[#allocation2 + $0x40] sm:$0xff] %vm610, %v579
  %620 = vst.msk [vmem:[#allocation2 + $0x48] sm:$0xff] %vm610, %v581
  %621 = vst.msk [vmem:[#allocation2 + $0x50] sm:$0xff] %vm610, %v583
  %622 = vst.msk [vmem:[#allocation2 + $0x58] sm:$0xff] %vm610, %v585
  %623 = vst.msk [vmem:[#allocation2 + $0x60] sm:$0xff] %vm610, %v587
  %624 = vst.msk [vmem:[#allocation2 + $0x68] sm:$0xff] %vm610, %v589
  %625 = vst.msk [vmem:[#allocation2 + $0x70] sm:$0xff] %vm610, %v591
  %626 = vst.msk [vmem:[#allocation2 + $0x78] sm:$0xff] %vm610, %v593
  %v627 = vld [vmem:[#allocation2] sm:$0xff]
  %v628 = vld [vmem:[#allocation2 + $0x8] sm:$0xff]
  %v629 = vld [vmem:[#allocation2 + $0x10] sm:$0xff]
  %v630 = vld [vmem:[#allocation2 + $0x18] sm:$0xff]
  %v631 = vld [vmem:[#allocation2 + $0x20] sm:$0xff]
  %v632 = vld [vmem:[#allocation2 + $0x28] sm:$0xff]
  %v633 = vld [vmem:[#allocation2 + $0x30] sm:$0xff]
  %v634 = vld [vmem:[#allocation2 + $0x38] sm:$0xff]
  %v635 = vld [vmem:[#allocation2 + $0x40] sm:$0xff]
  %v636 = vld [vmem:[#allocation2 + $0x48] sm:$0xff]
  %v637 = vld [vmem:[#allocation2 + $0x50] sm:$0xff]
  %v638 = vld [vmem:[#allocation2 + $0x58] sm:$0xff]
  %v639 = vld [vmem:[#allocation2 + $0x60] sm:$0xff]
  %v640 = vld [vmem:[#allocation2 + $0x68] sm:$0xff]
  %v641 = vld [vmem:[#allocation2 + $0x70] sm:$0xff]
  %v642 = vld [vmem:[#allocation2 + $0x78] sm:$0xff]
  %v643 = vld [vmem:[%s1] sm:$0xf]
  %v644 = vld [vmem:[%s1 + $0x4] sm:$0xf]
  %v645 = vld [vmem:[%s1 + $0x8] sm:$0xf]
  %v646 = vld [vmem:[%s1 + $0xc] sm:$0xf]
  %v647 = vld [vmem:[%s1 + $0x10] sm:$0xf]
  %v648 = vld [vmem:[%s1 + $0x14] sm:$0xf]
  %v649 = vld [vmem:[%s1 + $0x18] sm:$0xf]
  %v650 = vld [vmem:[%s1 + $0x1c] sm:$0xf]
  %v651 = vld [vmem:[%s1 + $0x20] sm:$0xf]
  %v652 = vld [vmem:[%s1 + $0x24] sm:$0xf]
  %v653 = vld [vmem:[%s1 + $0x28] sm:$0xf]
  %v654 = vld [vmem:[%s1 + $0x2c] sm:$0xf]
  %v655 = vld [vmem:[%s1 + $0x30] sm:$0xf]
  %v656 = vld [vmem:[%s1 + $0x34] sm:$0xf]
  %v657 = vld [vmem:[%s1 + $0x38] sm:$0xf]
  %v658 = vld [vmem:[%s1 + $0x3c] sm:$0xf]
  %v659 = vld [vmem:[%s2] sm:$0x1]
  %v661 = vlaneseq
  %v662 = vshrl.u32 %v661, 7
  %v663 = vsub.s32 0, %v662
  %v664 = vrot.slane %v659, %v663
  %v682 = vunpack.c.l.b16 %v643
  %v683 = vunpack.c.l.b16 %v644
  %v684 = vunpack.c.l.b16 %v645
  %v685 = vunpack.c.l.b16 %v646
  %v686 = vunpack.c.l.b16 %v647
  %v687 = vunpack.c.l.b16 %v648
  %v688 = vunpack.c.l.b16 %v649
  %v689 = vunpack.c.l.b16 %v650
  %v690 = vunpack.c.l.b16 %v651
  %v691 = vunpack.c.l.b16 %v652
  %v692 = vunpack.c.l.b16 %v653
  %v693 = vunpack.c.l.b16 %v654
  %v694 = vunpack.c.l.b16 %v655
  %v695 = vunpack.c.l.b16 %v656
  %v696 = vunpack.c.l.b16 %v657
  %v697 = vunpack.c.l.b16 %v658
  %v698 = vpack.c.b16 %v683, %v682
  %v699 = vpack.c.b16 %v685, %v684
  %v700 = vpack.c.b16 %v687, %v686
  %v701 = vpack.c.b16 %v689, %v688
  %v702 = vpack.c.b16 %v691, %v690
  %v703 = vpack.c.b16 %v693, %v692
  %v704 = vpack.c.b16 %v695, %v694
  %v705 = vpack.c.b16 %v697, %v696
  %714 = vmatprep.subr.bf16.mxu0 0
  %715 = vmatpush1.bf16.msra.mxu0 %v698
  %716 = vmatprep.subr.bf16.mxu0 0
  %717 = vmatpush1.bf16.msra.mxu0 %v699
  %718 = vmatprep.subr.bf16.mxu0 0
  %719 = vmatpush1.bf16.msra.mxu0 %v700
  %720 = vmatprep.subr.bf16.mxu0 0
  %721 = vmatpush1.bf16.msra.mxu0 %v701
  %722 = vmatprep.subr.bf16.mxu0 0
  %723 = vmatpush1.bf16.msra.mxu0 %v702
  %724 = vmatprep.subr.bf16.mxu0 0
  %725 = vmatpush1.bf16.msra.mxu0 %v703
  %726 = vmatprep.subr.bf16.mxu0 0
  %727 = vmatpush1.bf16.msra.mxu0 %v704
  %728 = vmatprep.subr.bf16.mxu0 0
  %729 = vmatpush1.bf16.msra.mxu0 %v705
  %730 = vmatprep.subr.bf16.mxu0 0
  %731 = vmatpush1.bf16.msra.mxu0 0
  %732 = vmatprep.subr.bf16.mxu0 0
  %733 = vmatpush1.bf16.msra.mxu0 0
  %734 = vmatprep.subr.bf16.mxu0 0
  %735 = vmatpush1.bf16.msra.mxu0 0
  %736 = vmatprep.subr.bf16.mxu0 0
  %737 = vmatpush1.bf16.msra.mxu0 0
  %738 = vmatprep.subr.bf16.mxu0 0
  %739 = vmatpush1.bf16.msra.mxu0 0
  %740 = vmatprep.subr.bf16.mxu0 0
  %741 = vmatpush1.bf16.msra.mxu0 0
  %742 = vmatprep.subr.bf16.mxu0 0
  %743 = vmatpush1.bf16.msra.mxu0 0
  %744 = vmatprep.subr.bf16.mxu0 0
  %745 = vmatpush1.bf16.msra.mxu0 0
  %746 = vmatprep.mubr.bf16.mxu0 0
  %747 = vmatmul.mubr.bf16.gmra.mrb[0].mxu0 %v627
  %v748 = vpop.f32.mrb[0].mxu0
  %v749 = vadd.f32 %v664, %v748
  %v750 = vpop.f32.mrb[0].mxu0
  %v751 = vpop.f32.mrb[0].mxu0
  %v752 = vadd.f32 %v664, %v751
  %v753 = vpop.f32.mrb[0].mxu0
  %754 = vmatprep.mubr.bf16.mxu0 0
  %755 = vmatmul.mubr.bf16.gmra.mrb[0].mxu0 %v628
  %v756 = vpop.f32.mrb[0].mxu0
  %v757 = vadd.f32 %v664, %v756
  %v758 = vpop.f32.mrb[0].mxu0
  %v759 = vpop.f32.mrb[0].mxu0
  %v760 = vadd.f32 %v664, %v759
  %v761 = vpop.f32.mrb[0].mxu0
  %762 = vmatprep.mubr.bf16.mxu0 0
  %763 = vmatmul.mubr.bf16.gmra.mrb[0].mxu0 %v629
  %v764 = vpop.f32.mrb[0].mxu0
  %v765 = vadd.f32 %v664, %v764
  %v766 = vpop.f32.mrb[0].mxu0
  %v767 = vpop.f32.mrb[0].mxu0
  %v768 = vadd.f32 %v664, %v767
  %v769 = vpop.f32.mrb[0].mxu0
  %770 = vmatprep.mubr.bf16.mxu0 0
  %771 = vmatmul.mubr.bf16.gmra.mrb[0].mxu0 %v630
  %v772 = vpop.f32.mrb[0].mxu0
  %v773 = vadd.f32 %v664, %v772
  %v774 = vpop.f32.mrb[0].mxu0
  %v775 = vpop.f32.mrb[0].mxu0
  %v776 = vadd.f32 %v664, %v775
  %v777 = vpop.f32.mrb[0].mxu0
  %778 = vmatprep.mubr.bf16.mxu0 0
  %779 = vmatmul.mubr.bf16.gmra.mrb[0].mxu0 %v631
  %v780 = vpop.f32.mrb[0].mxu0
  %v781 = vadd.f32 %v664, %v780
  %v782 = vpop.f32.mrb[0].mxu0
  %v783 = vpop.f32.mrb[0].mxu0
  %v784 = vadd.f32 %v664, %v783
  %v785 = vpop.f32.mrb[0].mxu0
  %786 = vmatprep.mubr.bf16.mxu0 0
  %787 = vmatmul.mubr.bf16.gmra.mrb[0].mxu0 %v632
  %v788 = vpop.f32.mrb[0].mxu0
  %v789 = vadd.f32 %v664, %v788
  %v790 = vpop.f32.mrb[0].mxu0
  %v791 = vpop.f32.mrb[0].mxu0
  %v792 = vadd.f32 %v664, %v791
  %v793 = vpop.f32.mrb[0].mxu0
  %794 = vmatprep.mubr.bf16.mxu0 0
  %795 = vmatmul.mubr.bf16.gmra.mrb[0].mxu0 %v633
  %v796 = vpop.f32.mrb[0].mxu0
  %v797 = vadd.f32 %v664, %v796
  %v798 = vpop.f32.mrb[0].mxu0
  %v799 = vpop.f32.mrb[0].mxu0
  %v800 = vadd.f32 %v664, %v799
  %v801 = vpop.f32.mrb[0].mxu0
  %802 = vmatprep.mubr.bf16.mxu0 0
  %803 = vmatmul.mubr.bf16.gmra.mrb[0].mxu0 %v634
  %v804 = vpop.f32.mrb[0].mxu0
  %v805 = vadd.f32 %v664, %v804
  %v806 = vpop.f32.mrb[0].mxu0
  %v807 = vpop.f32.mrb[0].mxu0
  %v808 = vadd.f32 %v664, %v807
  %v809 = vpop.f32.mrb[0].mxu0
  %810 = vmatprep.mubr.bf16.mxu0 0
  %811 = vmatmul.mubr.bf16.gmra.mrb[0].mxu0 %v635
  %v812 = vpop.f32.mrb[0].mxu0
  %v813 = vadd.f32 %v664, %v812
  %v814 = vpop.f32.mrb[0].mxu0
  %v815 = vpop.f32.mrb[0].mxu0
  %v816 = vadd.f32 %v664, %v815
  %v817 = vpop.f32.mrb[0].mxu0
  %818 = vmatprep.mubr.bf16.mxu0 0
  %819 = vmatmul.mubr.bf16.gmra.mrb[0].mxu0 %v636
  %v820 = vpop.f32.mrb[0].mxu0
  %v821 = vadd.f32 %v664, %v820
  %v822 = vpop.f32.mrb[0].mxu0
  %v823 = vpop.f32.mrb[0].mxu0
  %v824 = vadd.f32 %v664, %v823
  %v825 = vpop.f32.mrb[0].mxu0
  %826 = vmatprep.mubr.bf16.mxu0 0
  %827 = vmatmul.mubr.bf16.gmra.mrb[0].mxu0 %v637
  %v828 = vpop.f32.mrb[0].mxu0
  %v829 = vadd.f32 %v664, %v828
  %v830 = vpop.f32.mrb[0].mxu0
  %v831 = vpop.f32.mrb[0].mxu0
  %v832 = vadd.f32 %v664, %v831
  %v833 = vpop.f32.mrb[0].mxu0
  %834 = vmatprep.mubr.bf16.mxu0 0
  %835 = vmatmul.mubr.bf16.gmra.mrb[0].mxu0 %v638
  %v836 = vpop.f32.mrb[0].mxu0
  %v837 = vadd.f32 %v664, %v836
  %v838 = vpop.f32.mrb[0].mxu0
  %v839 = vpop.f32.mrb[0].mxu0
  %v840 = vadd.f32 %v664, %v839
  %v841 = vpop.f32.mrb[0].mxu0
  %842 = vmatprep.mubr.bf16.mxu0 0
  %843 = vmatmul.mubr.bf16.gmra.mrb[0].mxu0 %v639
  %v844 = vpop.f32.mrb[0].mxu0
  %v845 = vadd.f32 %v664, %v844
  %v846 = vpop.f32.mrb[0].mxu0
  %v847 = vpop.f32.mrb[0].mxu0
  %v848 = vadd.f32 %v664, %v847
  %v849 = vpop.f32.mrb[0].mxu0
  %850 = vmatprep.mubr.bf16.mxu0 0
  %851 = vmatmul.mubr.bf16.gmra.mrb[0].mxu0 %v640
  %v852 = vpop.f32.mrb[0].mxu0
  %v853 = vadd.f32 %v664, %v852
  %v854 = vpop.f32.mrb[0].mxu0
  %v855 = vpop.f32.mrb[0].mxu0
  %v856 = vadd.f32 %v664, %v855
  %v857 = vpop.f32.mrb[0].mxu0
  %858 = vmatprep.mubr.bf16.mxu0 0
  %859 = vmatmul.mubr.bf16.gmra.mrb[0].mxu0 %v641
  %v860 = vpop.f32.mrb[0].mxu0
  %v861 = vadd.f32 %v664, %v860
  %v862 = vpop.f32.mrb[0].mxu0
  %v863 = vpop.f32.mrb[0].mxu0
  %v864 = vadd.f32 %v664, %v863
  %v865 = vpop.f32.mrb[0].mxu0
  %866 = vmatprep.mubr.bf16.mxu0 0
  %867 = vmatmul.mubr.bf16.gmra.mrb[0].mxu0 %v642
  %v868 = vpop.f32.mrb[0].mxu0
  %v869 = vadd.f32 %v664, %v868
  %v870 = vpop.f32.mrb[0].mxu0
  %v871 = vpop.f32.mrb[0].mxu0
  %v872 = vadd.f32 %v664, %v871
  %v873 = vpop.f32.mrb[0].mxu0
  %874 = vdwg.mxu0
  %vm875 = vcmask 130048
  %876 = vst.msk [vmem:[%s3] sm:$0xff] %vm875, %v749
  %877 = vst.msk [vmem:[%s3 + $0x8] sm:$0xff] %vm875, %v752
  %878 = vst.msk [vmem:[%s3 + $0x10] sm:$0xff] %vm875, %v757
  %879 = vst.msk [vmem:[%s3 + $0x18] sm:$0xff] %vm875, %v760
  %880 = vst.msk [vmem:[%s3 + $0x20] sm:$0xff] %vm875, %v765
  %881 = vst.msk [vmem:[%s3 + $0x28] sm:$0xff] %vm875, %v768
  %882 = vst.msk [vmem:[%s3 + $0x30] sm:$0xff] %vm875, %v773
  %883 = vst.msk [vmem:[%s3 + $0x38] sm:$0xff] %vm875, %v776
  %884 = vst.msk [vmem:[%s3 + $0x40] sm:$0xff] %vm875, %v781
  %885 = vst.msk [vmem:[%s3 + $0x48] sm:$0xff] %vm875, %v784
  %886 = vst.msk [vmem:[%s3 + $0x50] sm:$0xff] %vm875, %v789
  %887 = vst.msk [vmem:[%s3 + $0x58] sm:$0xff] %vm875, %v792
  %888 = vst.msk [vmem:[%s3 + $0x60] sm:$0xff] %vm875, %v797
  %889 = vst.msk [vmem:[%s3 + $0x68] sm:$0xff] %vm875, %v800
  %890 = vst.msk [vmem:[%s3 + $0x70] sm:$0xff] %vm875, %v805
  %891 = vst.msk [vmem:[%s3 + $0x78] sm:$0xff] %vm875, %v808
  %892 = vst.msk [vmem:[%s3 + $0x80] sm:$0xff] %vm875, %v813
  %893 = vst.msk [vmem:[%s3 + $0x88] sm:$0xff] %vm875, %v816
  %894 = vst.msk [vmem:[%s3 + $0x90] sm:$0xff] %vm875, %v821
  %895 = vst.msk [vmem:[%s3 + $0x98] sm:$0xff] %vm875, %v824
  %896 = vst.msk [vmem:[%s3 + $0xa0] sm:$0xff] %vm875, %v829
  %897 = vst.msk [vmem:[%s3 + $0xa8] sm:$0xff] %vm875, %v832
  %898 = vst.msk [vmem:[%s3 + $0xb0] sm:$0xff] %vm875, %v837
  %899 = vst.msk [vmem:[%s3 + $0xb8] sm:$0xff] %vm875, %v840
  %900 = vst.msk [vmem:[%s3 + $0xc0] sm:$0xff] %vm875, %v845
  %901 = vst.msk [vmem:[%s3 + $0xc8] sm:$0xff] %vm875, %v848
  %902 = vst.msk [vmem:[%s3 + $0xd0] sm:$0xff] %vm875, %v853
  %903 = vst.msk [vmem:[%s3 + $0xd8] sm:$0xff] %vm875, %v856
  %904 = vst.msk [vmem:[%s3 + $0xe0] sm:$0xff] %vm875, %v861
  %905 = vst.msk [vmem:[%s3 + $0xe8] sm:$0xff] %vm875, %v864
  %906 = vst.msk [vmem:[%s3 + $0xf0] sm:$0xff] %vm875, %v869
  %907 = vst.msk [vmem:[%s3 + $0xf8] sm:$0xff] %vm875, %v872
  // Predicated region
  $region14: #{tpu_custom_call.1} parent=0 // pred_check
    _
  $region15: #{tpu_custom_call.1} parent=0 // pred_check_branch
    %909 = sbr.rel (0) target = $region17
  $region16: #{tpu_custom_call.1} parent=0 // pred_region
    _
  $region17: #{tpu_custom_call.1} parent=0 // pred_fallthru
    _
  // Predicated region
  $region18: #{tpu_custom_call.1} parent=0 // pred_check
    _
  $region19: #{tpu_custom_call.1} parent=0 // pred_check_branch
    %911 = sbr.rel (0) target = $region21
  $region20: #{tpu_custom_call.1} parent=0 // pred_region
    _
  $region21: #{tpu_custom_call.1} parent=0 // pred_fallthru
    _

</llo_original>
